<compile_context>
chip_gen: v7x
topology: tpu7x:2x2x1
jax: 0.10.0
libtpu: 0.0.40
codegen_flags: <defaults>
</compile_context>

<pallas_src>
import jax
import jax.numpy as jnp
from jax.experimental import pallas as pl
from jax.experimental.pallas import tpu as pltpu

SIGMA_MIN = 1e-4


def _round_up(x, m):
    return (x + m - 1) // m * m


# --------------------------------------------------------------------------- #
# Fused kernel: flow interpolation -> stand-in estimator -> loss partials.
# Per grid step the block is (C_pad, T_TILE).
# --------------------------------------------------------------------------- #
def _cfm_fused_kernel(t_ref, x1_ref, mu_ref, z_ref, mask_ref, bias_ref,
                      w1y_ref, w1m_ref, w2_ref, b2_ref,
                      y_ref, sq_ref):
    b = pl.program_id(0)
    t_b = t_ref[b]                                   # f32 scalar (SMEM)

    x1 = x1_ref[0].astype(jnp.float32)               # (C_pad, T_TILE)
    mu = mu_ref[0].astype(jnp.float32)               # (C_pad, T_TILE)
    z = z_ref[0].astype(jnp.float32)                 # (C_pad, T_TILE), 0 in padding
    mask = mask_ref[0].astype(jnp.float32)           # (1, T_TILE)

    # ---- conditional-flow interpolation ------------------------------------
    one_m = 1.0 - SIGMA_MIN
    y = (1.0 - one_m * t_b) * z + t_b * x1
    u = x1 - one_m * z                               # stays in VMEM
    y_ref[0] = y.astype(y_ref.dtype)

    # ---- stand-in estimator: two MXU dots + snakebeta + output proj --------
    # (no pre-masking of y/mu: the final out*mask makes it redundant)
    h = jnp.dot(w1y_ref[...], y, preferred_element_type=jnp.float32)
    h = h + jnp.dot(w1m_ref[...], mu, preferred_element_type=jnp.float32)
    h = h + bias_ref[0]                              # b1 + time-emb, (H, 1)
    h = h + jnp.sin(h) ** 2                          # snakebeta (alpha=beta=1)
    out = jnp.dot(w2_ref[...], h, preferred_element_type=jnp.float32) + b2_ref[...]
    pred = out * mask                                # (C_pad, T_TILE)

    # ---- loss partial (reduced in the wrapper) ------------------------------
    d = pred - u
    sq = jnp.sum(jnp.sum(d * d, axis=1, keepdims=True), axis=0, keepdims=True)
    sq_ref[0, 0] = sq                                # (1, 1)


def _cfm_fused(t, x1_p, mu_p, z_p, mask_p, bias, w1y, w1m, w2, b2,
               *, t_tile, out_dtype):
    B, C_pad, T_pad = x1_p.shape
    NT = T_pad // t_tile
    H = w1y.shape[0]

    return pl.pallas_call(
        _cfm_fused_kernel,
        out_shape=(
            jax.ShapeDtypeStruct((B, C_pad, T_pad), out_dtype),   # y
            jax.ShapeDtypeStruct((B, NT, 1, 1), jnp.float32),     # sq partials
        ),
        grid_spec=pl.GridSpec(
            grid=(B, NT),
            in_specs=[
                pl.BlockSpec(memory_space=pltpu.MemorySpace.SMEM),           # t (B,)
                pl.BlockSpec((1, C_pad, t_tile), lambda b, ti: (b, 0, ti)),  # x1
                pl.BlockSpec((1, C_pad, t_tile), lambda b, ti: (b, 0, ti)),  # mu
                pl.BlockSpec((1, C_pad, t_tile), lambda b, ti: (b, 0, ti)),  # z
                pl.BlockSpec((1, 1, t_tile), lambda b, ti: (b, 0, ti)),      # mask
                pl.BlockSpec((1, H, 1), lambda b, ti: (b, 0, 0)),            # b1+temb
                pl.BlockSpec((H, C_pad), lambda b, ti: (0, 0)),              # W1y
                pl.BlockSpec((H, C_pad), lambda b, ti: (0, 0)),              # W1m
                pl.BlockSpec((C_pad, H), lambda b, ti: (0, 0)),              # W2
                pl.BlockSpec((C_pad, 1), lambda b, ti: (0, 0)),              # b2
            ],
            out_specs=(
                pl.BlockSpec((1, C_pad, t_tile), lambda b, ti: (b, 0, ti)),  # y
                pl.BlockSpec((1, 1, 1, 1), lambda b, ti: (b, ti, 0, 0)),     # sq
            ),
        ),
        compiler_params=pltpu.CompilerParams(
            dimension_semantics=("parallel", "parallel"),
        ),
    )(t, x1_p, mu_p, z_p, mask_p, bias, w1y, w1m, w2, b2)


# --------------------------------------------------------------------------- #
# Plain-JAX glue: tiny stand-in estimator params + sinusoidal time embedding
# --------------------------------------------------------------------------- #
def init_params(key, n_feats, hidden):
    ks = jax.random.split(key, 4)
    s = 0.1
    return dict(
        wt=jax.random.normal(ks[0], (hidden, hidden), jnp.float32) * s,
        bt=jnp.zeros((hidden,), jnp.float32),
        w1y=jax.random.normal(ks[1], (hidden, n_feats), jnp.float32) * s,
        w1m=jax.random.normal(ks[2], (hidden, n_feats), jnp.float32) * s,
        b1=jnp.zeros((hidden,), jnp.float32),
        w2=jax.random.normal(ks[3], (n_feats, hidden), jnp.float32) * s,
        b2=jnp.zeros((n_feats,), jnp.float32),
    )


def time_embedding(t, params):
    """Sinusoidal embedding of scalar t per batch + small dense; returns (B, H)."""
    H = params["wt"].shape[0]
    half = H // 2
    freqs = jnp.exp(-jnp.log(10000.0) * jnp.arange(half, dtype=jnp.float32)
                    / max(half - 1, 1))
    args = t[:, None] * freqs[None, :]                               # (B, half)
    emb = jnp.concatenate([jnp.sin(args), jnp.cos(args)], axis=-1)   # (B, H)
    return jnp.tanh(emb @ params["wt"] + params["bt"])               # (B, H)


# --------------------------------------------------------------------------- #
# CFM.forward / compute_loss
# --------------------------------------------------------------------------- #
@jax.jit
def cfm_forward(x1, mask, mu, params, key):
    B, C, T = x1.shape
    k_t, k_z = jax.random.split(key)
    t = jax.random.uniform(k_t, (B,), dtype=jnp.float32)   # torch.rand([b,1,1])
    z = jax.random.normal(k_z, (B, C, T), jnp.float32)     # torch.randn_like(x1)

    # Fold b1 + time embedding into one per-batch bias -> (B, H, 1).
    bias = (time_embedding(t, params) + params["b1"][None, :])[:, :, None]

    # Pad channels to the 8-sublane granule and frames to a lane-dense T tile.
    C_pad = _round_up(C, 8)
    T_TILE = min(512, _round_up(T, 128))
    T_pad = _round_up(T, T_TILE)
    pc = C_pad - C

    def pad_ct(a):
        return jnp.pad(a, ((0, 0), (0, C_pad - a.shape[1]), (0, T_pad - a.shape[2])))

    x1_p = pad_ct(x1)
    mu_p = pad_ct(mu)
    z_p = pad_ct(z)                                  # zero z in padding -> u, y clean
    mask_f = mask.astype(jnp.float32)
    mask_p = jnp.pad(mask_f, ((0, 0), (0, 0), (0, T_pad - T)))

    # Zero-padded stand-in estimator weights.
    w1y = jnp.pad(params["w1y"], ((0, 0), (0, pc)))   # (H, C_pad)
    w1m = jnp.pad(params["w1m"], ((0, 0), (0, pc)))   # (H, C_pad)
    w2 = jnp.pad(params["w2"], ((0, pc), (0, 0)))     # (C_pad, H)
    b2 = jnp.pad(params["b2"], (0, pc))[:, None]      # (C_pad, 1)

    y_p, sq = _cfm_fused(t, x1_p, mu_p, z_p, mask_p, bias, w1y, w1m, w2, b2,
                         t_tile=T_TILE, out_dtype=x1.dtype)

    y = y_p[:, :C, :T]
    loss = jnp.sum(sq) / (jnp.sum(mask_f) * jnp.float32(C))
    return loss, y


if __name__ == "__main__":
    B, C, T, H = 2, 4, 16, 32          # batch, n_feats, mel_timesteps, hidden

    root = jax.random.PRNGKey(0)
    k_x1, k_mu, k_fwd, k_par = jax.random.split(root, 4)

    x1 = jax.random.normal(k_x1, (B, C, T), jnp.float32)     # target mel
    mu = jax.random.normal(k_mu, (B, C, T), jnp.float32)     # encoder output
    lengths = jnp.array([T, T - 4], dtype=jnp.int32)
    mask = (jnp.arange(T)[None, :] < lengths[:, None]).astype(jnp.float32)
    mask = mask[:, None, :]                                  # (B, 1, T)

    params = init_params(k_par, C, H)

    loss, y = cfm_forward(x1, mask, mu, params, k_fwd)
    jax.block_until_ready((loss, y))
    assert y.shape == (B, C, T) and loss.shape == ()
    assert bool(jnp.isfinite(loss)) and bool(jnp.all(jnp.isfinite(y)))
    print("KERNEL_OK")
</pallas_src>

<mosaic_0001>
module attributes {stable_mosaic.version = 11 : i64} {
  func.func @_cfm_fused_kernel(%arg0: i32, %arg1: i32, %arg2: memref<2xf32, #tpu.memory_space<smem>>, %arg3: memref<1x8x128xf32, #tpu.memory_space<vmem>>, %arg4: memref<1x8x128xf32, #tpu.memory_space<vmem>>, %arg5: memref<1x8x128xf32, #tpu.memory_space<vmem>>, %arg6: memref<1x1x128xf32, #tpu.memory_space<vmem>>, %arg7: memref<1x32x1xf32, #tpu.memory_space<vmem>>, %arg8: memref<32x8xf32, #tpu.memory_space<vmem>>, %arg9: memref<32x8xf32, #tpu.memory_space<vmem>>, %arg10: memref<8x32xf32, #tpu.memory_space<vmem>>, %arg11: memref<8x1xf32, #tpu.memory_space<vmem>>, %arg12: memref<1x8x128xf32, #tpu.memory_space<vmem>>, %arg13: memref<1x1x1x1xf32, #tpu.memory_space<vmem>>) attributes {dimension_semantics = [#tpu.dimension_semantics<parallel>, #tpu.dimension_semantics<parallel>], iteration_bounds = array<i64: 2, 1>, scalar_prefetch = 0 : i64, scratch_operands = 0 : i64, tpu.core_type = #tpu.core_type<tc>, window_params = [{transform_indices = @transform_0, window_bounds = array<i64: 2>}, {transform_indices = @transform_1, window_bounds = array<i64: 1, 8, 128>}, {transform_indices = @transform_2, window_bounds = array<i64: 1, 8, 128>}, {transform_indices = @transform_3, window_bounds = array<i64: 1, 8, 128>}, {transform_indices = @transform_4, window_bounds = array<i64: 1, 1, 128>}, {transform_indices = @transform_5, window_bounds = array<i64: 1, 32, 1>}, {pipeline_mode = #tpu.pipeline_mode<synchronous>, transform_indices = @transform_6, window_bounds = array<i64: 32, 8>}, {pipeline_mode = #tpu.pipeline_mode<synchronous>, transform_indices = @transform_7, window_bounds = array<i64: 32, 8>}, {pipeline_mode = #tpu.pipeline_mode<synchronous>, transform_indices = @transform_8, window_bounds = array<i64: 8, 32>}, {pipeline_mode = #tpu.pipeline_mode<synchronous>, transform_indices = @transform_9, window_bounds = array<i64: 8, 1>}, {transform_indices = @transform_10, window_bounds = array<i64: 1, 8, 128>}, {transform_indices = @transform_11, window_bounds = array<i64: 1, 1, 1, 1>}]} {
    %0 = arith.index_cast %arg0 : i32 to index
    %1 = memref.load %arg2[%0] : memref<2xf32, #tpu.memory_space<smem>>
    %c0 = arith.constant 0 : index
    %c0_0 = arith.constant 0 : index
    %c0_1 = arith.constant 0 : index
    %2 = vector.load %arg3[%c0, %c0_0, %c0_1] : memref<1x8x128xf32, #tpu.memory_space<vmem>>, vector<1x8x128xf32>
    %3 = vector.shape_cast %2 : vector<1x8x128xf32> to vector<8x128xf32>
    %c0_2 = arith.constant 0 : index
    %c0_3 = arith.constant 0 : index
    %c0_4 = arith.constant 0 : index
    %4 = vector.load %arg4[%c0_2, %c0_3, %c0_4] : memref<1x8x128xf32, #tpu.memory_space<vmem>>, vector<1x8x128xf32>
    %5 = vector.shape_cast %4 : vector<1x8x128xf32> to vector<8x128xf32>
    %c0_5 = arith.constant 0 : index
    %c0_6 = arith.constant 0 : index
    %c0_7 = arith.constant 0 : index
    %6 = vector.load %arg5[%c0_5, %c0_6, %c0_7] : memref<1x8x128xf32, #tpu.memory_space<vmem>>, vector<1x8x128xf32>
    %7 = vector.shape_cast %6 : vector<1x8x128xf32> to vector<8x128xf32>
    %c0_8 = arith.constant 0 : index
    %c0_9 = arith.constant 0 : index
    %c0_10 = arith.constant 0 : index
    %8 = vector.load %arg6[%c0_8, %c0_9, %c0_10] : memref<1x1x128xf32, #tpu.memory_space<vmem>>, vector<1x1x128xf32>
    %9 = vector.shape_cast %8 : vector<1x1x128xf32> to vector<1x128xf32>
    %cst = arith.constant 0.999899983 : f32
    %10 = arith.mulf %cst, %1 : f32
    %cst_11 = arith.constant 1.000000e+00 : f32
    %11 = arith.subf %cst_11, %10 : f32
    %12 = vector.broadcast %11 : f32 to vector<8x128xf32>
    %13 = arith.mulf %12, %7 : vector<8x128xf32>
    %14 = vector.broadcast %1 : f32 to vector<8x128xf32>
    %15 = arith.mulf %14, %3 : vector<8x128xf32>
    %16 = arith.addf %13, %15 : vector<8x128xf32>
    %cst_12 = arith.constant 0.999899983 : f32
    %17 = vector.broadcast %cst_12 : f32 to vector<8x128xf32>
    %18 = arith.mulf %17, %7 : vector<8x128xf32>
    %19 = arith.subf %3, %18 : vector<8x128xf32>
    %c0_13 = arith.constant 0 : index
    %c0_14 = arith.constant 0 : index
    %c0_15 = arith.constant 0 : index
    %20 = vector.load %arg12[%c0_13, %c0_14, %c0_15] : memref<1x8x128xf32, #tpu.memory_space<vmem>>, vector<1x8x128xf32>
    %21 = vector.shape_cast %20 : vector<1x8x128xf32> to vector<8x128xf32>
    %22 = vector.shape_cast %16 : vector<8x128xf32> to vector<1x8x128xf32>
    tpu.vector_store %arg12[%c0_13, %c0_14, %c0_15], %22 {strides = array<i32>} : memref<1x8x128xf32, #tpu.memory_space<vmem>>, vector<1x8x128xf32>,
    %c0_16 = arith.constant 0 : index
    %c0_17 = arith.constant 0 : index
    %23 = vector.load %arg8[%c0_16, %c0_17] : memref<32x8xf32, #tpu.memory_space<vmem>>, vector<32x8xf32>
    %cst_18 = arith.constant dense<0.000000e+00> : vector<32x128xf32>
    %24 = tpu.matmul %23, %16, %cst_18 {dimension_numbers = #tpu.dot_dimension_numbers<[1], [0], [0], [1], [0, 0, 1, 1], [], []>} : vector<32x8xf32>, vector<8x128xf32>, vector<32x128xf32> -> vector<32x128xf32>
    %c0_19 = arith.constant 0 : index
    %c0_20 = arith.constant 0 : index
    %25 = vector.load %arg9[%c0_19, %c0_20] : memref<32x8xf32, #tpu.memory_space<vmem>>, vector<32x8xf32>
    %cst_21 = arith.constant dense<0.000000e+00> : vector<32x128xf32>
    %26 = tpu.matmul %25, %5, %cst_21 {dimension_numbers = #tpu.dot_dimension_numbers<[1], [0], [0], [1], [0, 0, 1, 1], [], []>} : vector<32x8xf32>, vector<8x128xf32>, vector<32x128xf32> -> vector<32x128xf32>
    %27 = arith.addf %24, %26 : vector<32x128xf32>
    %c0_22 = arith.constant 0 : index
    %c0_23 = arith.constant 0 : index
    %c0_24 = arith.constant 0 : index
    %28 = vector.load %arg7[%c0_22, %c0_23, %c0_24] : memref<1x32x1xf32, #tpu.memory_space<vmem>>, vector<1x32x1xf32>
    %29 = vector.shape_cast %28 : vector<1x32x1xf32> to vector<32x1xf32>
    %30 = vector.broadcast %29 : vector<32x1xf32> to vector<32x128xf32>
    %31 = arith.addf %27, %30 : vector<32x128xf32>
    %32 = math.sin %31 : vector<32x128xf32>
    %33 = arith.mulf %32, %32 : vector<32x128xf32>
    %34 = arith.addf %31, %33 : vector<32x128xf32>
    %c0_25 = arith.constant 0 : index
    %c0_26 = arith.constant 0 : index
    %35 = vector.load %arg10[%c0_25, %c0_26] : memref<8x32xf32, #tpu.memory_space<vmem>>, vector<8x32xf32>
    %cst_27 = arith.constant dense<0.000000e+00> : vector<8x128xf32>
    %36 = tpu.matmul %35, %34, %cst_27 {dimension_numbers = #tpu.dot_dimension_numbers<[1], [0], [0], [1], [0, 0, 1, 1], [], []>} : vector<8x32xf32>, vector<32x128xf32>, vector<8x128xf32> -> vector<8x128xf32>
    %c0_28 = arith.constant 0 : index
    %c0_29 = arith.constant 0 : index
    %37 = vector.load %arg11[%c0_28, %c0_29] : memref<8x1xf32, #tpu.memory_space<vmem>>, vector<8x1xf32>
    %38 = vector.broadcast %37 : vector<8x1xf32> to vector<8x128xf32>
    %39 = arith.addf %36, %38 : vector<8x128xf32>
    %40 = vector.broadcast %9 : vector<1x128xf32> to vector<8x128xf32>
    %41 = arith.mulf %39, %40 : vector<8x128xf32>
    %42 = arith.subf %41, %19 : vector<8x128xf32>
    %43 = arith.mulf %42, %42 : vector<8x128xf32>
    %cst_30 = arith.constant dense<0.000000e+00> : vector<8xf32>
    %44 = vector.multi_reduction <add>, %43, %cst_30 [1] : vector<8x128xf32> to vector<8xf32>
    %45 = vector.shape_cast %44 : vector<8xf32> to vector<8x1xf32>
    %cst_31 = arith.constant dense<0.000000e+00> : vector<1xf32>
    %46 = vector.multi_reduction <add>, %45, %cst_31 [0] : vector<8x1xf32> to vector<1xf32>
    %47 = vector.shape_cast %46 : vector<1xf32> to vector<1x1xf32>
    %c0_32 = arith.constant 0 : index
    %c0_33 = arith.constant 0 : index
    %c0_34 = arith.constant 0 : index
    %c0_35 = arith.constant 0 : index
    %48 = vector.load %arg13[%c0_32, %c0_33, %c0_34, %c0_35] : memref<1x1x1x1xf32, #tpu.memory_space<vmem>>, vector<1x1x1x1xf32>
    %49 = vector.shape_cast %48 : vector<1x1x1x1xf32> to vector<1x1xf32>
    %50 = vector.shape_cast %47 : vector<1x1xf32> to vector<1x1x1x1xf32>
    tpu.vector_store %arg13[%c0_32, %c0_33, %c0_34, %c0_35], %50 {strides = array<i32>} : memref<1x1x1x1xf32, #tpu.memory_space<vmem>>, vector<1x1x1x1xf32>,
    return
  }
  func.func @transform_0(%arg0: i32, %arg1: i32) -> i32 {
    %c0_i32 = arith.constant 0 : i32
    %c0_i32_0 = arith.constant 0 : i32
    return %c0_i32 : i32
  }
  func.func @transform_1(%arg0: i32, %arg1: i32) -> (i32, i32, i32) {
    %c0_i32 = arith.constant 0 : i32
    %c0_i32_0 = arith.constant 0 : i32
    return %arg0, %c0_i32, %arg1 : i32, i32, i32
  }
  func.func @transform_2(%arg0: i32, %arg1: i32) -> (i32, i32, i32) {
    %c0_i32 = arith.constant 0 : i32
    %c0_i32_0 = arith.constant 0 : i32
    return %arg0, %c0_i32, %arg1 : i32, i32, i32
  }
  func.func @transform_3(%arg0: i32, %arg1: i32) -> (i32, i32, i32) {
    %c0_i32 = arith.constant 0 : i32
    %c0_i32_0 = arith.constant 0 : i32
    return %arg0, %c0_i32, %arg1 : i32, i32, i32
  }
  func.func @transform_4(%arg0: i32, %arg1: i32) -> (i32, i32, i32) {
    %c0_i32 = arith.constant 0 : i32
    %c0_i32_0 = arith.constant 0 : i32
    return %arg0, %c0_i32, %arg1 : i32, i32, i32
  }
  func.func @transform_5(%arg0: i32, %arg1: i32) -> (i32, i32, i32) {
    %c0_i32 = arith.constant 0 : i32
    %c0_i32_0 = arith.constant 0 : i32
    %c0_i32_1 = arith.constant 0 : i32
    return %arg0, %c0_i32, %c0_i32_0 : i32, i32, i32
  }
  func.func @transform_6(%arg0: i32, %arg1: i32) -> (i32, i32) {
    %c0_i32 = arith.constant 0 : i32
    %c0_i32_0 = arith.constant 0 : i32
    %c0_i32_1 = arith.constant 0 : i32
    return %c0_i32, %c0_i32_0 : i32, i32
  }
  func.func @transform_7(%arg0: i32, %arg1: i32) -> (i32, i32) {
    %c0_i32 = arith.constant 0 : i32
    %c0_i32_0 = arith.constant 0 : i32
    %c0_i32_1 = arith.constant 0 : i32
    return %c0_i32, %c0_i32_0 : i32, i32
  }
  func.func @transform_8(%arg0: i32, %arg1: i32) -> (i32, i32) {
    %c0_i32 = arith.constant 0 : i32
    %c0_i32_0 = arith.constant 0 : i32
    %c0_i32_1 = arith.constant 0 : i32
    return %c0_i32, %c0_i32_0 : i32, i32
  }
  func.func @transform_9(%arg0: i32, %arg1: i32) -> (i32, i32) {
    %c0_i32 = arith.constant 0 : i32
    %c0_i32_0 = arith.constant 0 : i32
    %c0_i32_1 = arith.constant 0 : i32
    return %c0_i32, %c0_i32_0 : i32, i32
  }
  func.func @transform_10(%arg0: i32, %arg1: i32) -> (i32, i32, i32) {
    %c0_i32 = arith.constant 0 : i32
    %c0_i32_0 = arith.constant 0 : i32
    return %arg0, %c0_i32, %arg1 : i32, i32, i32
  }
  func.func @transform_11(%arg0: i32, %arg1: i32) -> (i32, i32, i32, i32) {
    %c0_i32 = arith.constant 0 : i32
    %c0_i32_0 = arith.constant 0 : i32
    %c0_i32_1 = arith.constant 0 : i32
    return %arg0, %arg1, %c0_i32, %c0_i32_0 : i32, i32, i32, i32
  }
}

</mosaic_0001>

<llo_original>
// kernel: cfm_forward.11
$region0: #{cfm_forward.11}
  #allocation0 [shape = 'u32[]', space=smem, size = 0x4, offset = 0x4, fixed_abs, tag = 'smem constant byte address 0x4 - core index']
  #allocation1 [shape = 'u32[144,128]{1,0:T(1,128)}', space=vmem, size = 0x12000, scoped, tag = 'internal scratch']
  %s0 = inlined_call_operand.vmem [shape: f32[2], index: 0, kind: input, shape index: {}]
  %s1 = inlined_call_operand.vmem [shape: f32[2,8,128], index: 1, kind: input, shape index: {}]
  %s2 = inlined_call_operand.vmem [shape: f32[2,8,128], index: 2, kind: input, shape index: {}]
  %s3 = inlined_call_operand.vmem [shape: f32[2,8,128], index: 3, kind: input, shape index: {}]
  %s4 = inlined_call_operand.vmem [shape: f32[2,1,128], index: 4, kind: input, shape index: {}]
  %s5 = inlined_call_operand.vmem [shape: f32[2,32,1], index: 5, kind: input, shape index: {}]
  %s6 = inlined_call_operand.vmem [shape: f32[32,8], index: 6, kind: input, shape index: {}]
  %s7 = inlined_call_operand.vmem [shape: f32[32,8], index: 7, kind: input, shape index: {}]
  %s8 = inlined_call_operand.vmem [shape: f32[8,32], index: 8, kind: input, shape index: {}]
  %s9 = inlined_call_operand.vmem [shape: f32[8,1], index: 9, kind: input, shape index: {}]
  %s10 = inlined_call_operand.vmem [shape: f32[2,8,128], index: 10, kind: output, shape index: {0}]
  %s11 = inlined_call_operand.vmem [shape: f32[2,1,1,1], index: 11, kind: output, shape index: {1}]
  %12 = xla_tuple %s10, %s11
  %s13 = sld [smem:[#allocation0]]
  $region85: #{cfm_forward.11} parent=0
    _
  %s15 = ssub.s32 1, %s13
  %s16 = scalar_select 0, %s15, %s13
  $region1: #{cfm_forward.11} parent=0
    #allocation2 [shape = 'u8[512]{0}', space=smem, size = 0x200, scoped, tag = 'input window, operand 0, single buffered']
    #allocation3 [shape = 's32[2]{0}', space=sflag, size = 0x8, scoped, tag = 'scoped memory for cfm_forward.11']
    %17 = vsyncpa [#allocation3], 0
    loop: start=0, step=1, limit=4
    $region2: #{cfm_forward.11} parent=1 // loop_pre_header
      _
    $region3: #{cfm_forward.11} parent=1 // loop_header
      %s19 = sphi 0, %s23
      %p20 = scmp.ge.s32.totalorder %s19, 4
      %s26 = sphi 0, %s38
      %s27 = sphi 0, %s34
      %s28 = sphi 0, %s26
      %s29 = sphi 0, %s27
      %s30 = sphi 0, %s28
      %s31 = sphi 0, %s29
      %s39 = sphi 0, %s39
      %s41 = sphi 0, %s39
      %s42 = sphi 0, %s41
      %s56 = sphi 0, %s42
      %s64 = sphi 0, %s66
      %s67 = sphi 0, %s64
      %s68 = sphi 0, %s67
      %s84 = sphi 0, %s68
      %s92 = sphi 0, %s94
      %s95 = sphi 0, %s92
      %s96 = sphi 0, %s95
      %s112 = sphi 0, %s96
      %s120 = sphi 0, %s122
      %s123 = sphi 0, %s120
      %s124 = sphi 0, %s123
      %s140 = sphi 0, %s124
      %s148 = sphi 0, %s150
      %s151 = sphi 0, %s148
      %s152 = sphi 0, %s151
      %s168 = sphi 0, %s152
      %s174 = sphi 0, %s176
      %s177 = sphi 0, %s174
      %s178 = sphi 0, %s177
      %s194 = sphi 0, %s178
      %s198 = sphi 0, %s198
      %s200 = sphi 0, %s198
      %s201 = sphi 0, %s200
      %s215 = sphi 0, %s201
      %s219 = sphi 0, %s219
      %s221 = sphi 0, %s219
      %s222 = sphi 0, %s221
      %s236 = sphi 0, %s222
      %s240 = sphi 0, %s240
      %s242 = sphi 0, %s240
      %s243 = sphi 0, %s242
      %s257 = sphi 0, %s243
      %s261 = sphi 0, %s261
      %s263 = sphi 0, %s261
      %s264 = sphi 0, %s263
      %s278 = sphi 0, %s264
      %s286 = sphi 0, %s288
      %s289 = sphi 0, %s286
      %s290 = sphi 0, %s289
      %s306 = sphi 0, %s290
      %s314 = sphi 0, %s316
      %s317 = sphi 0, %s314
      %s318 = sphi 0, %s317
      %s334 = sphi 0, %s318
    $region4: #{cfm_forward.11} parent=1 // loop_header_branch
      %22 = sbr.rel (%p20) target = $region8
    $region5: #{cfm_forward.11} parent=1 // loop_body
      %s24 = ssub.s32 %s19, 1
      %s25 = ssub.s32 %s19, 2
      %s32 = sadd.s32 1, %s27
      %p33 = scmp.ge.s32.totalorder %s32, 1
      %s34 = scalar_select %p33, 0, %s32
      %s35 = sadd.s32 1, %s26
      %s36 = scalar_select %p33, %s35, %s26
      %p37 = scmp.ge.s32.totalorder %s36, 2
      %s38 = scalar_select %p37, 0, %s36
      %s40 = sadd.s32 %s39, 1
      %p43 = scmp.eq.s32.totalorder %s19, 1
      %p44 = scmp.ne.s32.totalorder %s39, %s41
      %p45 = scmp.eq.s32.totalorder %s19, 0
      %p46 = por %p44, %p45
      %p47 = scmp.ne.s32.totalorder %s39, %s41
      %p48 = scmp.eq.s32.totalorder %s24, 1
      %p49 = por %p47, %p48
      %p50 = scmp.ne.s32.totalorder %s41, %s42
      %p51 = scmp.eq.s32.totalorder %s24, 0
      %p52 = por %p50, %p51
      %p53 = scmp.ne.s32.totalorder %s41, %s42
      %p54 = scmp.eq.s32.totalorder %s25, 1
      %p55 = por %p53, %p54
      %p57 = scmp.ne.s32.totalorder %s42, %s56
      %p58 = scmp.eq.s32.totalorder %s25, 0
      %p59 = por %p57, %p58
      %s60 = ssub.s32 %s26, %s38
      %s61 = ssub.s32 %s27, %s34
      %s62 = sor.u32 %s60, %s61
      %p63 = scmp.eq.s32.totalorder %s62, 0
      %s65 = sadd.s32 %s64, 1
      %s66 = scalar_select %p63, %s64, %s65
      %p69 = pneg %p63
      %p70 = scmp.eq.s32.totalorder %s19, 1
      %p71 = por %p69, %p70
      %p72 = scmp.ne.s32.totalorder %s64, %s67
      %p73 = scmp.eq.s32.totalorder %s19, 0
      %p74 = por %p72, %p73
      %p75 = scmp.ne.s32.totalorder %s64, %s67
      %p76 = scmp.eq.s32.totalorder %s24, 1
      %p77 = por %p75, %p76
      %p78 = scmp.ne.s32.totalorder %s67, %s68
      %p79 = scmp.eq.s32.totalorder %s24, 0
      %p80 = por %p78, %p79
      %p81 = scmp.ne.s32.totalorder %s67, %s68
      %p82 = scmp.eq.s32.totalorder %s25, 1
      %p83 = por %p81, %p82
      %p85 = scmp.ne.s32.totalorder %s68, %s84
      %p86 = scmp.eq.s32.totalorder %s25, 0
      %p87 = por %p85, %p86
      %s88 = ssub.s32 %s26, %s38
      %s89 = ssub.s32 %s27, %s34
      %s90 = sor.u32 %s88, %s89
      %p91 = scmp.eq.s32.totalorder %s90, 0
      %s93 = sadd.s32 %s92, 1
      %s94 = scalar_select %p91, %s92, %s93
      %p97 = pneg %p91
      %p98 = scmp.eq.s32.totalorder %s19, 1
      %p99 = por %p97, %p98
      %p100 = scmp.ne.s32.totalorder %s92, %s95
      %p101 = scmp.eq.s32.totalorder %s19, 0
      %p102 = por %p100, %p101
      %p103 = scmp.ne.s32.totalorder %s92, %s95
      %p104 = scmp.eq.s32.totalorder %s24, 1
      %p105 = por %p103, %p104
      %p106 = scmp.ne.s32.totalorder %s95, %s96
      %p107 = scmp.eq.s32.totalorder %s24, 0
      %p108 = por %p106, %p107
      %p109 = scmp.ne.s32.totalorder %s95, %s96
      %p110 = scmp.eq.s32.totalorder %s25, 1
      %p111 = por %p109, %p110
      %p113 = scmp.ne.s32.totalorder %s96, %s112
      %p114 = scmp.eq.s32.totalorder %s25, 0
      %p115 = por %p113, %p114
      %s116 = ssub.s32 %s26, %s38
      %s117 = ssub.s32 %s27, %s34
      %s118 = sor.u32 %s116, %s117
      %p119 = scmp.eq.s32.totalorder %s118, 0
      %s121 = sadd.s32 %s120, 1
      %s122 = scalar_select %p119, %s120, %s121
      %p125 = pneg %p119
      %p126 = scmp.eq.s32.totalorder %s19, 1
      %p127 = por %p125, %p126
      %p128 = scmp.ne.s32.totalorder %s120, %s123
      %p129 = scmp.eq.s32.totalorder %s19, 0
      %p130 = por %p128, %p129
      %p131 = scmp.ne.s32.totalorder %s120, %s123
      %p132 = scmp.eq.s32.totalorder %s24, 1
      %p133 = por %p131, %p132
      %p134 = scmp.ne.s32.totalorder %s123, %s124
      %p135 = scmp.eq.s32.totalorder %s24, 0
      %p136 = por %p134, %p135
      %p137 = scmp.ne.s32.totalorder %s123, %s124
      %p138 = scmp.eq.s32.totalorder %s25, 1
      %p139 = por %p137, %p138
      %p141 = scmp.ne.s32.totalorder %s124, %s140
      %p142 = scmp.eq.s32.totalorder %s25, 0
      %p143 = por %p141, %p142
      %s144 = ssub.s32 %s26, %s38
      %s145 = ssub.s32 %s27, %s34
      %s146 = sor.u32 %s144, %s145
      %p147 = scmp.eq.s32.totalorder %s146, 0
      %s149 = sadd.s32 %s148, 1
      %s150 = scalar_select %p147, %s148, %s149
      %p153 = pneg %p147
      %p154 = scmp.eq.s32.totalorder %s19, 1
      %p155 = por %p153, %p154
      %p156 = scmp.ne.s32.totalorder %s148, %s151
      %p157 = scmp.eq.s32.totalorder %s19, 0
      %p158 = por %p156, %p157
      %p159 = scmp.ne.s32.totalorder %s148, %s151
      %p160 = scmp.eq.s32.totalorder %s24, 1
      %p161 = por %p159, %p160
      %p162 = scmp.ne.s32.totalorder %s151, %s152
      %p163 = scmp.eq.s32.totalorder %s24, 0
      %p164 = por %p162, %p163
      %p165 = scmp.ne.s32.totalorder %s151, %s152
      %p166 = scmp.eq.s32.totalorder %s25, 1
      %p167 = por %p165, %p166
      %p169 = scmp.ne.s32.totalorder %s152, %s168
      %p170 = scmp.eq.s32.totalorder %s25, 0
      %p171 = por %p169, %p170
      %s172 = ssub.s32 %s26, %s38
      %p173 = scmp.eq.s32.totalorder %s172, 0
      %s175 = sadd.s32 %s174, 1
      %s176 = scalar_select %p173, %s174, %s175
      %p179 = pneg %p173
      %p180 = scmp.eq.s32.totalorder %s19, 1
      %p181 = por %p179, %p180
      %p182 = scmp.ne.s32.totalorder %s174, %s177
      %p183 = scmp.eq.s32.totalorder %s19, 0
      %p184 = por %p182, %p183
      %p185 = scmp.ne.s32.totalorder %s174, %s177
      %p186 = scmp.eq.s32.totalorder %s24, 1
      %p187 = por %p185, %p186
      %p188 = scmp.ne.s32.totalorder %s177, %s178
      %p189 = scmp.eq.s32.totalorder %s24, 0
      %p190 = por %p188, %p189
      %p191 = scmp.ne.s32.totalorder %s177, %s178
      %p192 = scmp.eq.s32.totalorder %s25, 1
      %p193 = por %p191, %p192
      %p195 = scmp.ne.s32.totalorder %s178, %s194
      %p196 = scmp.eq.s32.totalorder %s25, 0
      %p197 = por %p195, %p196
      %s199 = sadd.s32 %s198, 1
      %p202 = scmp.eq.s32.totalorder %s19, 1
      %p203 = scmp.ne.s32.totalorder %s198, %s200
      %p204 = scmp.eq.s32.totalorder %s19, 0
      %p205 = por %p203, %p204
      %p206 = scmp.ne.s32.totalorder %s198, %s200
      %p207 = scmp.eq.s32.totalorder %s24, 1
      %p208 = por %p206, %p207
      %p209 = scmp.ne.s32.totalorder %s200, %s201
      %p210 = scmp.eq.s32.totalorder %s24, 0
      %p211 = por %p209, %p210
      %p212 = scmp.ne.s32.totalorder %s200, %s201
      %p213 = scmp.eq.s32.totalorder %s25, 1
      %p214 = por %p212, %p213
      %p216 = scmp.ne.s32.totalorder %s201, %s215
      %p217 = scmp.eq.s32.totalorder %s25, 0
      %p218 = por %p216, %p217
      %s220 = sadd.s32 %s219, 1
      %p223 = scmp.eq.s32.totalorder %s19, 1
      %p224 = scmp.ne.s32.totalorder %s219, %s221
      %p225 = scmp.eq.s32.totalorder %s19, 0
      %p226 = por %p224, %p225
      %p227 = scmp.ne.s32.totalorder %s219, %s221
      %p228 = scmp.eq.s32.totalorder %s24, 1
      %p229 = por %p227, %p228
      %p230 = scmp.ne.s32.totalorder %s221, %s222
      %p231 = scmp.eq.s32.totalorder %s24, 0
      %p232 = por %p230, %p231
      %p233 = scmp.ne.s32.totalorder %s221, %s222
      %p234 = scmp.eq.s32.totalorder %s25, 1
      %p235 = por %p233, %p234
      %p237 = scmp.ne.s32.totalorder %s222, %s236
      %p238 = scmp.eq.s32.totalorder %s25, 0
      %p239 = por %p237, %p238
      %s241 = sadd.s32 %s240, 1
      %p244 = scmp.eq.s32.totalorder %s19, 1
      %p245 = scmp.ne.s32.totalorder %s240, %s242
      %p246 = scmp.eq.s32.totalorder %s19, 0
      %p247 = por %p245, %p246
      %p248 = scmp.ne.s32.totalorder %s240, %s242
      %p249 = scmp.eq.s32.totalorder %s24, 1
      %p250 = por %p248, %p249
      %p251 = scmp.ne.s32.totalorder %s242, %s243
      %p252 = scmp.eq.s32.totalorder %s24, 0
      %p253 = por %p251, %p252
      %p254 = scmp.ne.s32.totalorder %s242, %s243
      %p255 = scmp.eq.s32.totalorder %s25, 1
      %p256 = por %p254, %p255
      %p258 = scmp.ne.s32.totalorder %s243, %s257
      %p259 = scmp.eq.s32.totalorder %s25, 0
      %p260 = por %p258, %p259
      %s262 = sadd.s32 %s261, 1
      %p265 = scmp.eq.s32.totalorder %s19, 1
      %p266 = scmp.ne.s32.totalorder %s261, %s263
      %p267 = scmp.eq.s32.totalorder %s19, 0
      %p268 = por %p266, %p267
      %p269 = scmp.ne.s32.totalorder %s261, %s263
      %p270 = scmp.eq.s32.totalorder %s24, 1
      %p271 = por %p269, %p270
      %p272 = scmp.ne.s32.totalorder %s263, %s264
      %p273 = scmp.eq.s32.totalorder %s24, 0
      %p274 = por %p272, %p273
      %p275 = scmp.ne.s32.totalorder %s263, %s264
      %p276 = scmp.eq.s32.totalorder %s25, 1
      %p277 = por %p275, %p276
      %p279 = scmp.ne.s32.totalorder %s264, %s278
      %p280 = scmp.eq.s32.totalorder %s25, 0
      %p281 = por %p279, %p280
      %s282 = ssub.s32 %s26, %s38
      %s283 = ssub.s32 %s27, %s34
      %s284 = sor.u32 %s282, %s283
      %p285 = scmp.eq.s32.totalorder %s284, 0
      %s287 = sadd.s32 %s286, 1
      %s288 = scalar_select %p285, %s286, %s287
      %p291 = pneg %p285
      %p292 = scmp.eq.s32.totalorder %s19, 1
      %p293 = por %p291, %p292
      %p294 = scmp.ne.s32.totalorder %s286, %s289
      %p295 = scmp.eq.s32.totalorder %s19, 0
      %p296 = por %p294, %p295
      %p297 = scmp.ne.s32.totalorder %s286, %s289
      %p298 = scmp.eq.s32.totalorder %s24, 1
      %p299 = por %p297, %p298
      %p300 = scmp.ne.s32.totalorder %s289, %s290
      %p301 = scmp.eq.s32.totalorder %s24, 0
      %p302 = por %p300, %p301
      %p303 = scmp.ne.s32.totalorder %s289, %s290
      %p304 = scmp.eq.s32.totalorder %s25, 1
      %p305 = por %p303, %p304
      %p307 = scmp.ne.s32.totalorder %s290, %s306
      %p308 = scmp.eq.s32.totalorder %s25, 0
      %p309 = por %p307, %p308
      %s310 = ssub.s32 %s26, %s38
      %s311 = ssub.s32 %s27, %s34
      %s312 = sor.u32 %s310, %s311
      %p313 = scmp.eq.s32.totalorder %s312, 0
      %s315 = sadd.s32 %s314, 1
      %s316 = scalar_select %p313, %s314, %s315
      %p319 = pneg %p313
      %p320 = scmp.eq.s32.totalorder %s19, 1
      %p321 = por %p319, %p320
      %p322 = scmp.ne.s32.totalorder %s314, %s317
      %p323 = scmp.eq.s32.totalorder %s19, 0
      %p324 = por %p322, %p323
      %p325 = scmp.ne.s32.totalorder %s314, %s317
      %p326 = scmp.eq.s32.totalorder %s24, 1
      %p327 = por %p325, %p326
      %p328 = scmp.ne.s32.totalorder %s317, %s318
      %p329 = scmp.eq.s32.totalorder %s24, 0
      %p330 = por %p328, %p329
      %p331 = scmp.ne.s32.totalorder %s317, %s318
      %p332 = scmp.eq.s32.totalorder %s25, 1
      %p333 = por %p331, %p332
      %p335 = scmp.ne.s32.totalorder %s318, %s334
      %p336 = scmp.eq.s32.totalorder %s25, 0
      %p337 = por %p335, %p336
      %p338 = scmp.le.s32.totalorder 1, %s19
      %p339 = scmp.lt.s32.totalorder %s19, 3
      %p340 = pnand %p338, %p339
      %p341 = pneg %p340
      // Predicated region
      $region9: #{cfm_forward.11} parent=5 // pred_check
        _
      $region10: #{cfm_forward.11} parent=5 // pred_check_branch
        %343 = sbr.rel (%p340) target = $region12
      $region11: #{cfm_forward.11} parent=5 // pred_region
        %s344 = ssub.s32 %s19, 1
        // Predicated region
        $region13: #{cfm_forward.11} parent=11 // pred_check
          %p345 = pneg %p52
        $region14: #{cfm_forward.11} parent=11 // pred_check_branch
          %347 = sbr.rel (%p345) target = $region16
        $region15: #{cfm_forward.11} parent=11 // pred_region
          %s349 = ssub.s32 16, 16
          %350 = vsyncadd [#allocation3], %s349
          %s352 = sshll.u32 %s0, 4
          %s353 = int_to_ptr.vmem [resolvable:$true] %s352
          %355 = dma.vmem_to_smem %s353, 16, [#allocation2], [#allocation3]
        $region16: #{cfm_forward.11} parent=11 // pred_fallthru
          _
        // Predicated region
        $region17: #{cfm_forward.11} parent=11 // pred_check
          %p356 = pneg %p211
        $region18: #{cfm_forward.11} parent=11 // pred_check_branch
          %358 = sbr.rel (%p356) target = $region20
        $region19: #{cfm_forward.11} parent=11 // pred_region
          _
        $region20: #{cfm_forward.11} parent=11 // pred_fallthru
          _
        // Predicated region
        $region21: #{cfm_forward.11} parent=11 // pred_check
          %p359 = pneg %p232
        $region22: #{cfm_forward.11} parent=11 // pred_check_branch
          %361 = sbr.rel (%p359) target = $region24
        $region23: #{cfm_forward.11} parent=11 // pred_region
          _
        $region24: #{cfm_forward.11} parent=11 // pred_fallthru
          _
        // Predicated region
        $region25: #{cfm_forward.11} parent=11 // pred_check
          %p362 = pneg %p253
        $region26: #{cfm_forward.11} parent=11 // pred_check_branch
          %364 = sbr.rel (%p362) target = $region28
        $region27: #{cfm_forward.11} parent=11 // pred_region
          _
        $region28: #{cfm_forward.11} parent=11 // pred_fallthru
          _
        // Predicated region
        $region29: #{cfm_forward.11} parent=11 // pred_check
          %p365 = pneg %p274
        $region30: #{cfm_forward.11} parent=11 // pred_check_branch
          %367 = sbr.rel (%p365) target = $region32
        $region31: #{cfm_forward.11} parent=11 // pred_region
          _
        $region32: #{cfm_forward.11} parent=11 // pred_fallthru
          _
      $region12: #{cfm_forward.11} parent=5 // pred_fallthru
        _
      %p368 = scmp.lt.s32.totalorder %s19, 2
      // Predicated region
      $region33: #{cfm_forward.11} parent=5 // pred_check
        %p369 = pneg %p368
      $region34: #{cfm_forward.11} parent=5 // pred_check_branch
        %371 = sbr.rel (%p369) target = $region36
      $region35: #{cfm_forward.11} parent=5 // pred_region
        // Predicated region
        $region37: #{cfm_forward.11} parent=35 // pred_check
          %p372 = pneg %p74
        $region38: #{cfm_forward.11} parent=35 // pred_check_branch
          %374 = sbr.rel (%p372) target = $region40
        $region39: #{cfm_forward.11} parent=35 // pred_region
          %p375 = scmp.lt.s32.totalorder %s26, 1
          %s376 = scalar_select %p375, %s26, 1
          %p377 = scmp.lt.s32.totalorder %s27, 0
          %s378 = scalar_select %p377, %s27, 0
          %s379 = sadd.s32 %s378, %s376
          %s380 = smul.addr %s379, 8
          %s381 = scalar_lea.vmem %s1, %s380
        $region40: #{cfm_forward.11} parent=35 // pred_fallthru
          _
        // Predicated region
        $region41: #{cfm_forward.11} parent=35 // pred_check
          %p382 = pneg %p102
        $region42: #{cfm_forward.11} parent=35 // pred_check_branch
          %384 = sbr.rel (%p382) target = $region44
        $region43: #{cfm_forward.11} parent=35 // pred_region
          %p385 = scmp.lt.s32.totalorder %s26, 1
          %s386 = scalar_select %p385, %s26, 1
          %p387 = scmp.lt.s32.totalorder %s27, 0
          %s388 = scalar_select %p387, %s27, 0
          %s389 = sadd.s32 %s388, %s386
          %s390 = smul.addr %s389, 8
          %s391 = scalar_lea.vmem %s2, %s390
        $region44: #{cfm_forward.11} parent=35 // pred_fallthru
          _
        // Predicated region
        $region45: #{cfm_forward.11} parent=35 // pred_check
          %p392 = pneg %p130
        $region46: #{cfm_forward.11} parent=35 // pred_check_branch
          %394 = sbr.rel (%p392) target = $region48
        $region47: #{cfm_forward.11} parent=35 // pred_region
          %p395 = scmp.lt.s32.totalorder %s26, 1
          %s396 = scalar_select %p395, %s26, 1
          %p397 = scmp.lt.s32.totalorder %s27, 0
          %s398 = scalar_select %p397, %s27, 0
          %s399 = sadd.s32 %s398, %s396
          %s400 = smul.addr %s399, 8
          %s401 = scalar_lea.vmem %s3, %s400
        $region48: #{cfm_forward.11} parent=35 // pred_fallthru
          _
        // Predicated region
        $region49: #{cfm_forward.11} parent=35 // pred_check
          %p402 = pneg %p158
        $region50: #{cfm_forward.11} parent=35 // pred_check_branch
          %404 = sbr.rel (%p402) target = $region52
        $region51: #{cfm_forward.11} parent=35 // pred_region
          %p405 = scmp.lt.s32.totalorder %s26, 1
          %s406 = scalar_select %p405, %s26, 1
          %p407 = scmp.lt.s32.totalorder %s27, 0
          %s408 = scalar_select %p407, %s27, 0
          %s409 = sadd.s32 %s408, %s406
          %s410 = scalar_lea.vmem %s4, %s409
        $region52: #{cfm_forward.11} parent=35 // pred_fallthru
          _
        // Predicated region
        $region53: #{cfm_forward.11} parent=35 // pred_check
          %p411 = pneg %p184
        $region54: #{cfm_forward.11} parent=35 // pred_check_branch
          %413 = sbr.rel (%p411) target = $region56
        $region55: #{cfm_forward.11} parent=35 // pred_region
          %p414 = scmp.lt.s32.totalorder %s26, 1
          %s415 = scalar_select %p414, %s26, 1
          %s416 = smul.addr %s415, 4
          %s417 = smul.addr %s416, 8
          %s418 = scalar_lea.vmem %s5, %s417
        $region56: #{cfm_forward.11} parent=35 // pred_fallthru
          _
      $region36: #{cfm_forward.11} parent=5 // pred_fallthru
        _
      %p419 = scmp.le.s32.totalorder 1, %s19
      %p420 = scmp.lt.s32.totalorder %s19, 3
      %p421 = pnand %p419, %p420
      %p422 = pneg %p421
      // Predicated region
      $region57: #{cfm_forward.11} parent=5 // pred_check
        _
      $region58: #{cfm_forward.11} parent=5 // pred_check_branch
        %424 = sbr.rel (%p421) target = $region60
      $region59: #{cfm_forward.11} parent=5 // pred_region
        %s425 = ssub.s32 %s19, 1
        // Predicated region
        $region61: #{cfm_forward.11} parent=59 // pred_check
          %p426 = pneg %p52
        $region62: #{cfm_forward.11} parent=59 // pred_check_branch
          %428 = sbr.rel (%p426) target = $region64
        $region63: #{cfm_forward.11} parent=59 // pred_region
          %429 = dma.done [#allocation3], 16
        $region64: #{cfm_forward.11} parent=59 // pred_fallthru
          _
        %430 = sfence
        %p431 = pneg %p52
        %p432 = pneg %p49
        %p433 = scmp.lt.s32.totalorder %s28, 1
        %s434 = scalar_select %p433, %s28, 1
        %p435 = scmp.lt.s32.totalorder %s29, 0
        %s436 = scalar_select %p435, %s29, 0
        %s437 = sadd.s32 %s436, %s434
        %s438 = smul.addr %s437, 8
        %s439 = scalar_lea.vmem %s1, %s438
        %p440 = pneg %p80
        %p441 = pneg %p77
        %p442 = scmp.lt.s32.totalorder %s28, 1
        %s443 = scalar_select %p442, %s28, 1
        %p444 = scmp.lt.s32.totalorder %s29, 0
        %s445 = scalar_select %p444, %s29, 0
        %s446 = sadd.s32 %s445, %s443
        %s447 = smul.addr %s446, 8
        %s448 = scalar_lea.vmem %s2, %s447
        %p449 = pneg %p108
        %p450 = pneg %p105
        %p451 = scmp.lt.s32.totalorder %s28, 1
        %s452 = scalar_select %p451, %s28, 1
        %p453 = scmp.lt.s32.totalorder %s29, 0
        %s454 = scalar_select %p453, %s29, 0
        %s455 = sadd.s32 %s454, %s452
        %s456 = smul.addr %s455, 8
        %s457 = scalar_lea.vmem %s3, %s456
        %p458 = pneg %p136
        %p459 = pneg %p133
        %p460 = scmp.lt.s32.totalorder %s28, 1
        %s461 = scalar_select %p460, %s28, 1
        %p462 = scmp.lt.s32.totalorder %s29, 0
        %s463 = scalar_select %p462, %s29, 0
        %s464 = sadd.s32 %s463, %s461
        %s465 = scalar_lea.vmem %s4, %s464
        %p466 = pneg %p164
        %p467 = pneg %p161
        %p468 = scmp.lt.s32.totalorder %s28, 1
        %s469 = scalar_select %p468, %s28, 1
        %s470 = smul.addr %s469, 4
        %s471 = smul.addr %s470, 8
        %s472 = scalar_lea.vmem %s5, %s471
        %p473 = pneg %p190
        %p474 = pneg %p187
        %p475 = pneg %p211
        %p476 = pneg %p208
        %p477 = pneg %p232
        %p478 = pneg %p229
        %p479 = pneg %p253
        %p480 = pneg %p250
        %p481 = pneg %p274
        %p482 = pneg %p271
        %p483 = pneg %p302
        %p484 = pneg %p299
        %p485 = scmp.lt.s32.totalorder %s28, 1
        %s486 = scalar_select %p485, %s28, 1
        %p487 = scmp.lt.s32.totalorder %s29, 0
        %s488 = scalar_select %p487, %s29, 0
        %s489 = sadd.s32 %s488, %s486
        %s490 = smul.addr %s489, 8
        %s491 = scalar_lea.vmem %s10, %s490
        %p492 = pneg %p330
        %p493 = pneg %p327
        %p494 = scmp.lt.s32.totalorder %s28, 1
        %s495 = scalar_select %p494, %s28, 1
        %p496 = scmp.lt.s32.totalorder %s29, 0
        %s497 = scalar_select %p496, %s29, 0
        %s498 = sadd.s32 %s497, %s495
        %s499 = scalar_lea.vmem %s11, %s498
        %p500 = scmp.lt.s32.totalorder %s28, 1
        %s501 = scalar_select %p500, %s28, 1
        %p502 = scmp.lt.s32.totalorder %s29, 0
        %s503 = scalar_select %p502, %s29, 0
        %s504 = sadd.s32 %s503, %s501
        %s505 = smul.addr %s504, 8
        %s506 = scalar_lea.vmem %s1, %s505
        %p507 = scmp.lt.s32.totalorder %s28, 1
        %s508 = scalar_select %p507, %s28, 1
        %p509 = scmp.lt.s32.totalorder %s29, 0
        %s510 = scalar_select %p509, %s29, 0
        %s511 = sadd.s32 %s510, %s508
        %s512 = smul.addr %s511, 8
        %s513 = scalar_lea.vmem %s2, %s512
        %p514 = scmp.lt.s32.totalorder %s28, 1
        %s515 = scalar_select %p514, %s28, 1
        %p516 = scmp.lt.s32.totalorder %s29, 0
        %s517 = scalar_select %p516, %s29, 0
        %s518 = sadd.s32 %s517, %s515
        %s519 = smul.addr %s518, 8
        %s520 = scalar_lea.vmem %s3, %s519
        %p521 = scmp.lt.s32.totalorder %s28, 1
        %s522 = scalar_select %p521, %s28, 1
        %p523 = scmp.lt.s32.totalorder %s29, 0
        %s524 = scalar_select %p523, %s29, 0
        %s525 = sadd.s32 %s524, %s522
        %s526 = scalar_lea.vmem %s4, %s525
        %p527 = scmp.lt.s32.totalorder %s28, 1
        %s528 = scalar_select %p527, %s28, 1
        %s529 = smul.addr %s528, 4
        %s530 = smul.addr %s529, 8
        %s531 = scalar_lea.vmem %s5, %s530
        %p532 = scmp.lt.s32.totalorder %s28, 1
        %s533 = scalar_select %p532, %s28, 1
        %p534 = scmp.lt.s32.totalorder %s29, 0
        %s535 = scalar_select %p534, %s29, 0
        %s536 = sadd.s32 %s535, %s533
        %s537 = smul.addr %s536, 8
        %s538 = scalar_lea.vmem %s10, %s537
        %p539 = scmp.lt.s32.totalorder %s28, 1
        %s540 = scalar_select %p539, %s28, 1
        %p541 = scmp.lt.s32.totalorder %s29, 0
        %s542 = scalar_select %p541, %s29, 0
        %s543 = sadd.s32 %s542, %s540
        %s544 = scalar_lea.vmem %s11, %s543
        %s545 = sld [smem:[#allocation2 + %s28]]
        %v546 = vld [vmem:[%s506] sm:$0xff]
        %v547 = vld [vmem:[%s513] sm:$0xff]
        %v548 = vld [vmem:[%s520] sm:$0xff]
        %v549 = vld [vmem:[%s526] sm:$0x1]
        %s550 = smul.f32 %s545, 0.9999
        %s551 = ssub.f32 1.0, %s550
        %v552 = vstv %s551
        %v553 = vmul.f32 %v552, %v548
        %v554 = vstv %s545
        %v555 = vmul.f32 %v554, %v546
        %v556 = vadd.f32 %v553, %v555
        %v557 = vmul.f32 %v548, 0.9999
        %v558 = vsub.f32 %v546, %v557
        %559 = vst [vmem:[%s538] sm:$0xff] %v556
        %v560 = vld [vmem:[%s6] sm:$0xff]
        %v561 = vld [vmem:[%s6 + $0x8] sm:$0xff]
        %v562 = vld [vmem:[%s6 + $0x10] sm:$0xff]
        %v563 = vld [vmem:[%s6 + $0x18] sm:$0xff]
        %v564 = vld [vmem:[%s7] sm:$0xff]
        %v565 = vld [vmem:[%s7 + $0x8] sm:$0xff]
        %v566 = vld [vmem:[%s7 + $0x10] sm:$0xff]
        %v567 = vld [vmem:[%s7 + $0x18] sm:$0xff]
        %vm568 = vcmask 64512
        %v570 = vsel %vm568, %v564, 0
        %v573 = vsel %vm568, %v565, 0
        %v576 = vsel %vm568, %v566, 0
        %v579 = vsel %vm568, %v567, 0
        %581 = vmatprep.subr.mxu0 0.0
        %582 = vmatpush1.msra.mxu0 %v547
        %583 = vmatprep.subr.mxu0 0.0
        %584 = vmatpush1.msra.mxu0 0.0
        %585 = vmatprep.subr.mxu0 0.0
        %586 = vmatpush1.msra.mxu0 0.0
        %587 = vmatprep.subr.mxu0 0.0
        %588 = vmatpush1.msra.mxu0 0.0
        %589 = vmatprep.subr.mxu0 0.0
        %590 = vmatpush1.msra.mxu0 0.0
        %591 = vmatprep.subr.mxu0 0.0
        %592 = vmatpush1.msra.mxu0 0.0
        %593 = vmatprep.subr.mxu0 0.0
        %594 = vmatpush1.msra.mxu0 0.0
        %595 = vmatprep.subr.mxu0 0.0
        %596 = vmatpush1.msra.mxu0 0.0
        %597 = vmatprep.subr.mxu0 0.0
        %598 = vmatpush1.msra.mxu0 0.0
        %599 = vmatprep.subr.mxu0 0.0
        %600 = vmatpush1.msra.mxu0 0.0
        %601 = vmatprep.subr.mxu0 0.0
        %602 = vmatpush1.msra.mxu0 0.0
        %603 = vmatprep.subr.mxu0 0.0
        %604 = vmatpush1.msra.mxu0 0.0
        %605 = vmatprep.subr.mxu0 0.0
        %606 = vmatpush1.msra.mxu0 0.0
        %607 = vmatprep.subr.mxu0 0.0
        %608 = vmatpush1.msra.mxu0 0.0
        %609 = vmatprep.subr.mxu0 0.0
        %610 = vmatpush1.msra.mxu0 0.0
        %611 = vmatprep.subr.mxu0 0.0
        %612 = vmatpush1.msra.mxu0 0.0
        %613 = vmatprep.subr.mxu0 0.0
        %614 = vmatpush1.msra.mxu0 0.0
        %615 = vmatprep.subr.mxu0 0.0
        %616 = vmatpush1.msra.mxu0 0.0
        %617 = vmatprep.subr.mxu0 0.0
        %618 = vmatpush1.msra.mxu0 0.0
        %619 = vmatprep.subr.mxu0 0.0
        %620 = vmatpush1.msra.mxu0 0.0
        %621 = vmatprep.subr.mxu0 0.0
        %622 = vmatpush1.msra.mxu0 0.0
        %623 = vmatprep.subr.mxu0 0.0
        %624 = vmatpush1.msra.mxu0 0.0
        %625 = vmatprep.subr.mxu0 0.0
        %626 = vmatpush1.msra.mxu0 0.0
        %627 = vmatprep.subr.mxu0 0.0
        %628 = vmatpush1.msra.mxu0 0.0
        %629 = vmatprep.subr.mxu0 0.0
        %630 = vmatpush1.msra.mxu0 0.0
        %631 = vmatprep.subr.mxu0 0.0
        %632 = vmatpush1.msra.mxu0 0.0
        %633 = vmatprep.subr.mxu0 0.0
        %634 = vmatpush1.msra.mxu0 0.0
        %635 = vmatprep.subr.mxu0 0.0
        %636 = vmatpush1.msra.mxu0 0.0
        %637 = vmatprep.subr.mxu0 0.0
        %638 = vmatpush1.msra.mxu0 0.0
        %639 = vmatprep.subr.mxu0 0.0
        %640 = vmatpush1.msra.mxu0 0.0
        %641 = vmatprep.subr.mxu0 0.0
        %642 = vmatpush1.msra.mxu0 0.0
        %643 = vmatprep.subr.mxu0 0.0
        %644 = vmatpush1.msra.mxu0 0.0
        %645 = vmatprep.mubr.f32.mxu0 0.0
        %646 = vmatmul.mubr.f32.gmra.mrb[0].mxu0 %v570
        %v647 = vpop.f32.mrb[0].mxu0
        %v648 = vadd.f32 0.0, %v647
        %v649 = vpop.f32.mrb[0].mxu0
        %650 = vmatprep.mubr.f32.mxu0 0.0
        %651 = vmatmul.mubr.f32.gmra.mrb[0].mxu0 %v573
        %v652 = vpop.f32.mrb[0].mxu0
        %v653 = vadd.f32 0.0, %v652
        %v654 = vpop.f32.mrb[0].mxu0
        %655 = vmatprep.mubr.f32.mxu0 0.0
        %656 = vmatmul.mubr.f32.gmra.mrb[0].mxu0 %v576
        %v657 = vpop.f32.mrb[0].mxu0
        %v658 = vadd.f32 0.0, %v657
        %v659 = vpop.f32.mrb[0].mxu0
        %660 = vmatprep.mubr.f32.mxu0 0.0
        %661 = vmatmul.mubr.f32.gmra.mrb[0].mxu0 %v579
        %v662 = vpop.f32.mrb[0].mxu0
        %v663 = vadd.f32 0.0, %v662
        %v664 = vpop.f32.mrb[0].mxu0
        %665 = vdwg.mxu0
        %v667 = vsel %vm568, %v560, 0
        %v670 = vsel %vm568, %v561, 0
        %v673 = vsel %vm568, %v562, 0
        %v676 = vsel %vm568, %v563, 0
        %678 = vmatprep.subr.mxu0 0.0
        %679 = vmatpush1.msra.mxu0 %v556
        %680 = vmatprep.subr.mxu0 0.0
        %681 = vmatpush1.msra.mxu0 0.0
        %682 = vmatprep.subr.mxu0 0.0
        %683 = vmatpush1.msra.mxu0 0.0
        %684 = vmatprep.subr.mxu0 0.0
        %685 = vmatpush1.msra.mxu0 0.0
        %686 = vmatprep.subr.mxu0 0.0
        %687 = vmatpush1.msra.mxu0 0.0
        %688 = vmatprep.subr.mxu0 0.0
        %689 = vmatpush1.msra.mxu0 0.0
        %690 = vmatprep.subr.mxu0 0.0
        %691 = vmatpush1.msra.mxu0 0.0
        %692 = vmatprep.subr.mxu0 0.0
        %693 = vmatpush1.msra.mxu0 0.0
        %694 = vmatprep.subr.mxu0 0.0
        %695 = vmatpush1.msra.mxu0 0.0
        %696 = vmatprep.subr.mxu0 0.0
        %697 = vmatpush1.msra.mxu0 0.0
        %698 = vmatprep.subr.mxu0 0.0
        %699 = vmatpush1.msra.mxu0 0.0
        %700 = vmatprep.subr.mxu0 0.0
        %701 = vmatpush1.msra.mxu0 0.0
        %702 = vmatprep.subr.mxu0 0.0
        %703 = vmatpush1.msra.mxu0 0.0
        %704 = vmatprep.subr.mxu0 0.0
        %705 = vmatpush1.msra.mxu0 0.0
        %706 = vmatprep.subr.mxu0 0.0
        %707 = vmatpush1.msra.mxu0 0.0
        %708 = vmatprep.subr.mxu0 0.0
        %709 = vmatpush1.msra.mxu0 0.0
        %710 = vmatprep.subr.mxu0 0.0
        %711 = vmatpush1.msra.mxu0 0.0
        %712 = vmatprep.subr.mxu0 0.0
        %713 = vmatpush1.msra.mxu0 0.0
        %714 = vmatprep.subr.mxu0 0.0
        %715 = vmatpush1.msra.mxu0 0.0
        %716 = vmatprep.subr.mxu0 0.0
        %717 = vmatpush1.msra.mxu0 0.0
        %718 = vmatprep.subr.mxu0 0.0
        %719 = vmatpush1.msra.mxu0 0.0
        %720 = vmatprep.subr.mxu0 0.0
        %721 = vmatpush1.msra.mxu0 0.0
        %722 = vmatprep.subr.mxu0 0.0
        %723 = vmatpush1.msra.mxu0 0.0
        %724 = vmatprep.subr.mxu0 0.0
        %725 = vmatpush1.msra.mxu0 0.0
        %726 = vmatprep.subr.mxu0 0.0
        %727 = vmatpush1.msra.mxu0 0.0
        %728 = vmatprep.subr.mxu0 0.0
        %729 = vmatpush1.msra.mxu0 0.0
        %730 = vmatprep.subr.mxu0 0.0
        %731 = vmatpush1.msra.mxu0 0.0
        %732 = vmatprep.subr.mxu0 0.0
        %733 = vmatpush1.msra.mxu0 0.0
        %734 = vmatprep.subr.mxu0 0.0
        %735 = vmatpush1.msra.mxu0 0.0
        %736 = vmatprep.subr.mxu0 0.0
        %737 = vmatpush1.msra.mxu0 0.0
        %738 = vmatprep.subr.mxu0 0.0
        %739 = vmatpush1.msra.mxu0 0.0
        %740 = vmatprep.subr.mxu0 0.0
        %741 = vmatpush1.msra.mxu0 0.0
        %742 = vmatprep.mubr.f32.mxu0 0.0
        %743 = vmatmul.mubr.f32.gmra.mrb[0].mxu0 %v667
        %v744 = vpop.f32.mrb[0].mxu0
        %v745 = vadd.f32 %v648, %v744
        %v746 = vpop.f32.mrb[0].mxu0
        %747 = vmatprep.mubr.f32.mxu0 0.0
        %748 = vmatmul.mubr.f32.gmra.mrb[0].mxu0 %v670
        %v749 = vpop.f32.mrb[0].mxu0
        %v750 = vadd.f32 %v653, %v749
        %v751 = vpop.f32.mrb[0].mxu0
        %752 = vmatprep.mubr.f32.mxu0 0.0
        %753 = vmatmul.mubr.f32.gmra.mrb[0].mxu0 %v673
        %v754 = vpop.f32.mrb[0].mxu0
        %v755 = vadd.f32 %v658, %v754
        %v756 = vpop.f32.mrb[0].mxu0
        %757 = vmatprep.mubr.f32.mxu0 0.0
        %758 = vmatmul.mubr.f32.gmra.mrb[0].mxu0 %v676
        %v759 = vpop.f32.mrb[0].mxu0
        %v760 = vadd.f32 %v663, %v759
        %v761 = vpop.f32.mrb[0].mxu0
        %762 = vdwg.mxu0
        %v763 = vld [vmem:[%s531] sm:$0xff]
        %v764 = vld [vmem:[%s531 + $0x8] sm:$0xff]
        %v765 = vld [vmem:[%s531 + $0x10] sm:$0xff]
        %v766 = vld [vmem:[%s531 + $0x18] sm:$0xff]
        %768 = vset.pattern.permute.xlu0 0
        %769 = vperm.xlu0 %768, %v763
        %v770 = vpop.permute.xlu0 %769
        %773 = vset.pattern.permute.xlu0 0
        %774 = vperm.xlu0 %773, %v764
        %v775 = vpop.permute.xlu0 %774
        %778 = vset.pattern.permute.xlu0 0
        %779 = vperm.xlu0 %778, %v765
        %v780 = vpop.permute.xlu0 %779
        %783 = vset.pattern.permute.xlu0 0
        %784 = vperm.xlu0 %783, %v766
        %v785 = vpop.permute.xlu0 %784
        %v787 = vadd.f32 %v745, %v770
        %v788 = vadd.f32 %v750, %v775
        %v789 = vadd.f32 %v755, %v780
        %v790 = vadd.f32 %v760, %v785
        %v791 = vand.u32 2147483647, %v787
        %vm792 = vcmp.le.f32.partialorder %v791, 0.7853982
        %vm793 = vcmp.lt.s32.totalorder %v787, 0
        %v794 = vand.u32 %v787, 2139095040
        %v795 = vshrl.u32 %v794, 23
        %v796 = vsub.s32 %v795, 127
        %v797 = vand.u32 2147483647, %v787
        %v798 = vand.u32 %v797, 8388607
        %v799 = vor.u32 %v798, 8388608
        %v800 = vsub.s32 0, %v799
        %v801 = vadd.s32 %v796, 1
        %vm802 = vcmp.gt.s32.totalorder %v801, 0
        %v803 = vsel %vm802, %v801, 0
        %v804 = vshrl.u32 %v803, 5
        %v805 = vand.u32 %v803, 31
        %v806 = vsub.s32 32, %v805
        %v807 = vshrl.u32 683565275, %v806
        %v808 = vshll.u32 683565275, %v805
        %v809 = vshrl.u32 2475754826, %v806
        %v810 = vor.u32 %v808, %v809
        %v811 = vshll.u32 2475754826, %v805
        %v812 = vshrl.u32 2131351028, %v806
        %v813 = vor.u32 %v811, %v812
        %v814 = vshll.u32 2131351028, %v805
        %v815 = vshrl.u32 2102212464, %v806
        %v816 = vor.u32 %v814, %v815
        %v817 = vshll.u32 2102212464, %v805
        %v818 = vshrl.u32 920167782, %v806
        %v819 = vor.u32 %v817, %v818
        %v820 = vshll.u32 920167782, %v805
        %v821 = vshrl.u32 1326507024, %v806
        %v822 = vor.u32 %v820, %v821
        %vm823 = vcmp.lt.s32.totalorder %v804, 1
        %vm824 = vcmp.lt.s32.totalorder %v804, 2
        %vm825 = vcmp.lt.s32.totalorder %v804, 3
        %vm826 = vcmp.lt.s32.totalorder %v804, 4
        %v827 = vsel %vm823, %v807, %v810
        %v828 = vsel %vm826, %v816, 2102212464
        %v829 = vsel %vm825, %v813, %v828
        %v830 = vsel %vm824, %v827, %v829
        %v831 = vsel %vm823, %v810, %v813
        %v832 = vsel %vm826, %v819, 920167782
        %v833 = vsel %vm825, %v816, %v832
        %v834 = vsel %vm824, %v831, %v833
        %v835 = vsel %vm823, %v813, %v816
        %v836 = vsel %vm826, %v822, 1326507024
        %v837 = vsel %vm825, %v819, %v836
        %v838 = vsel %vm824, %v835, %v837
        %v839 = vshll.u32 %v799, 8
        %v840 = vmul.u32.u64.compose %v839, %v838
        %v841 = vextract.low.u32 %v840
        %v842 = vextract.high.u32 %v840
        %v843 = vmul.u32.u64.compose %v839, %v834
        %v844 = vextract.low.u32 %v843
        %v845 = vextract.high.u32 %v843
        %v846 = vmul.u32 %v839, %v830
        %v847 = vadd.s32 %v842, %v844
        %vm848 = vc.u32 %v842, %v844
        %v849 = vadd.s32 %v845, 1
        %v850 = vsel %vm848, %v849, %v845
        %v851 = vadd.s32 %v846, %v850
        %v852 = vadd.s32 %v851, 536870912
        %v853 = vshrl.u32 %v852, 30
        %v854 = vshll.u32 %v853, 30
        %v855 = vsub.s32 %v851, %v854
        %vm856 = vcmp.lt.s32.totalorder %v855, 0
        %v857 = vsub.s32 0, %v855
        %v858 = vsel %vm856, %v857, %v855
        %v859 = vclz %v858
        %v860 = vsub.s32 %v859, 2
        %vm861 = vcmp.gt.s32.totalorder 0, %v860
        %v862 = vsel %vm861, 0, %v860
        %v863 = vsub.s32 32, %v862
        %v864 = vshll.u32 %v855, %v862
        %v865 = vshrl.u32 %v847, %v863
        %v866 = vor.u32 %v864, %v865
        %v867 = vsub.s32 4294967266, %v862
        %v868 = vadd.s32 %v867, 127
        %v869 = vshll.u32 %v868, 23
        %v870 = vor.u32 4788187, %v869
        %v871 = vand.u32 2147483647, %v870
        %v873 = vcvt.s32.f32 %v866
        %v874 = vmul.f32 %v873, %v871
        %v875 = vxor.u32 %v874, 2147483648
        %v876 = vsel %vm793, %v875, %v874
        %v877 = vsub.s32 4, %v853
        %v878 = vsel %vm793, %v877, %v853
        %v879 = vsel %vm792, %v787, %v876
        %v880 = vsel %vm792, 0, %v878
        %v881 = vcosq.f32.pop %v879
        %v882 = vsinq.f32.pop %v879
        %vm883 = vweird.f32 %v787
        %v884 = vadd.s32 %v880, 3
        %v885 = vand.u32 %v884, 3
        %vm886 = vcmp.lt.s32.totalorder %v885, 2
        %vm887 = vcmp.eq.s32.totalorder %v885, 0
        %v888 = vxor.u32 %v882, 2147483648
        %v889 = vsel %vm887, %v881, %v888
        %vm890 = vcmp.eq.s32.totalorder %v885, 2
        %v891 = vxor.u32 %v881, 2147483648
        %v892 = vsel %vm890, %v891, %v882
        %v893 = vsel %vm886, %v889, %v892
        %v894 = vsel %vm883, nan, %v893
        %v895 = vand.u32 2147483647, %v788
        %vm896 = vcmp.le.f32.partialorder %v895, 0.7853982
        %vm897 = vcmp.lt.s32.totalorder %v788, 0
        %v898 = vand.u32 %v788, 2139095040
        %v899 = vshrl.u32 %v898, 23
        %v900 = vsub.s32 %v899, 127
        %v901 = vand.u32 2147483647, %v788
        %v902 = vand.u32 %v901, 8388607
        %v903 = vor.u32 %v902, 8388608
        %v904 = vsub.s32 0, %v903
        %v905 = vadd.s32 %v900, 1
        %vm906 = vcmp.gt.s32.totalorder %v905, 0
        %v907 = vsel %vm906, %v905, 0
        %v908 = vshrl.u32 %v907, 5
        %v909 = vand.u32 %v907, 31
        %v910 = vsub.s32 32, %v909
        %v911 = vshrl.u32 683565275, %v910
        %v912 = vshll.u32 683565275, %v909
        %v913 = vshrl.u32 2475754826, %v910
        %v914 = vor.u32 %v912, %v913
        %v915 = vshll.u32 2475754826, %v909
        %v916 = vshrl.u32 2131351028, %v910
        %v917 = vor.u32 %v915, %v916
        %v918 = vshll.u32 2131351028, %v909
        %v919 = vshrl.u32 2102212464, %v910
        %v920 = vor.u32 %v918, %v919
        %v921 = vshll.u32 2102212464, %v909
        %v922 = vshrl.u32 920167782, %v910
        %v923 = vor.u32 %v921, %v922
        %v924 = vshll.u32 920167782, %v909
        %v925 = vshrl.u32 1326507024, %v910
        %v926 = vor.u32 %v924, %v925
        %vm927 = vcmp.lt.s32.totalorder %v908, 1
        %vm928 = vcmp.lt.s32.totalorder %v908, 2
        %vm929 = vcmp.lt.s32.totalorder %v908, 3
        %vm930 = vcmp.lt.s32.totalorder %v908, 4
        %v931 = vsel %vm927, %v911, %v914
        %v932 = vsel %vm930, %v920, 2102212464
        %v933 = vsel %vm929, %v917, %v932
        %v934 = vsel %vm928, %v931, %v933
        %v935 = vsel %vm927, %v914, %v917
        %v936 = vsel %vm930, %v923, 920167782
        %v937 = vsel %vm929, %v920, %v936
        %v938 = vsel %vm928, %v935, %v937
        %v939 = vsel %vm927, %v917, %v920
        %v940 = vsel %vm930, %v926, 1326507024
        %v941 = vsel %vm929, %v923, %v940
        %v942 = vsel %vm928, %v939, %v941
        %v943 = vshll.u32 %v903, 8
        %v944 = vmul.u32.u64.compose %v943, %v942
        %v945 = vextract.low.u32 %v944
        %v946 = vextract.high.u32 %v944
        %v947 = vmul.u32.u64.compose %v943, %v938
        %v948 = vextract.low.u32 %v947
        %v949 = vextract.high.u32 %v947
        %v950 = vmul.u32 %v943, %v934
        %v951 = vadd.s32 %v946, %v948
        %vm952 = vc.u32 %v946, %v948
        %v953 = vadd.s32 %v949, 1
        %v954 = vsel %vm952, %v953, %v949
        %v955 = vadd.s32 %v950, %v954
        %v956 = vadd.s32 %v955, 536870912
        %v957 = vshrl.u32 %v956, 30
        %v958 = vshll.u32 %v957, 30
        %v959 = vsub.s32 %v955, %v958
        %vm960 = vcmp.lt.s32.totalorder %v959, 0
        %v961 = vsub.s32 0, %v959
        %v962 = vsel %vm960, %v961, %v959
        %v963 = vclz %v962
        %v964 = vsub.s32 %v963, 2
        %vm965 = vcmp.gt.s32.totalorder 0, %v964
        %v966 = vsel %vm965, 0, %v964
        %v967 = vsub.s32 32, %v966
        %v968 = vshll.u32 %v959, %v966
        %v969 = vshrl.u32 %v951, %v967
        %v970 = vor.u32 %v968, %v969
        %v971 = vsub.s32 4294967266, %v966
        %v972 = vadd.s32 %v971, 127
        %v973 = vshll.u32 %v972, 23
        %v974 = vor.u32 4788187, %v973
        %v975 = vand.u32 2147483647, %v974
        %v977 = vcvt.s32.f32 %v970
        %v978 = vmul.f32 %v977, %v975
        %v979 = vxor.u32 %v978, 2147483648
        %v980 = vsel %vm897, %v979, %v978
        %v981 = vsub.s32 4, %v957
        %v982 = vsel %vm897, %v981, %v957
        %v983 = vsel %vm896, %v788, %v980
        %v984 = vsel %vm896, 0, %v982
        %v985 = vcosq.f32.pop %v983
        %v986 = vsinq.f32.pop %v983
        %vm987 = vweird.f32 %v788
        %v988 = vadd.s32 %v984, 3
        %v989 = vand.u32 %v988, 3
        %vm990 = vcmp.lt.s32.totalorder %v989, 2
        %vm991 = vcmp.eq.s32.totalorder %v989, 0
        %v992 = vxor.u32 %v986, 2147483648
        %v993 = vsel %vm991, %v985, %v992
        %vm994 = vcmp.eq.s32.totalorder %v989, 2
        %v995 = vxor.u32 %v985, 2147483648
        %v996 = vsel %vm994, %v995, %v986
        %v997 = vsel %vm990, %v993, %v996
        %v998 = vsel %vm987, nan, %v997
        %v999 = vand.u32 2147483647, %v789
        %vm1000 = vcmp.le.f32.partialorder %v999, 0.7853982
        %vm1001 = vcmp.lt.s32.totalorder %v789, 0
        %v1002 = vand.u32 %v789, 2139095040
        %v1003 = vshrl.u32 %v1002, 23
        %v1004 = vsub.s32 %v1003, 127
        %v1005 = vand.u32 2147483647, %v789
        %v1006 = vand.u32 %v1005, 8388607
        %v1007 = vor.u32 %v1006, 8388608
        %v1008 = vsub.s32 0, %v1007
        %v1009 = vadd.s32 %v1004, 1
        %vm1010 = vcmp.gt.s32.totalorder %v1009, 0
        %v1011 = vsel %vm1010, %v1009, 0
        %v1012 = vshrl.u32 %v1011, 5
        %v1013 = vand.u32 %v1011, 31
        %v1014 = vsub.s32 32, %v1013
        %v1015 = vshrl.u32 683565275, %v1014
        %v1016 = vshll.u32 683565275, %v1013
        %v1017 = vshrl.u32 2475754826, %v1014
        %v1018 = vor.u32 %v1016, %v1017
        %v1019 = vshll.u32 2475754826, %v1013
        %v1020 = vshrl.u32 2131351028, %v1014
        %v1021 = vor.u32 %v1019, %v1020
        %v1022 = vshll.u32 2131351028, %v1013
        %v1023 = vshrl.u32 2102212464, %v1014
        %v1024 = vor.u32 %v1022, %v1023
        %v1025 = vshll.u32 2102212464, %v1013
        %v1026 = vshrl.u32 920167782, %v1014
        %v1027 = vor.u32 %v1025, %v1026
        %v1028 = vshll.u32 920167782, %v1013
        %v1029 = vshrl.u32 1326507024, %v1014
        %v1030 = vor.u32 %v1028, %v1029
        %vm1031 = vcmp.lt.s32.totalorder %v1012, 1
        %vm1032 = vcmp.lt.s32.totalorder %v1012, 2
        %vm1033 = vcmp.lt.s32.totalorder %v1012, 3
        %vm1034 = vcmp.lt.s32.totalorder %v1012, 4
        %v1035 = vsel %vm1031, %v1015, %v1018
        %v1036 = vsel %vm1034, %v1024, 2102212464
        %v1037 = vsel %vm1033, %v1021, %v1036
        %v1038 = vsel %vm1032, %v1035, %v1037
        %v1039 = vsel %vm1031, %v1018, %v1021
        %v1040 = vsel %vm1034, %v1027, 920167782
        %v1041 = vsel %vm1033, %v1024, %v1040
        %v1042 = vsel %vm1032, %v1039, %v1041
        %v1043 = vsel %vm1031, %v1021, %v1024
        %v1044 = vsel %vm1034, %v1030, 1326507024
        %v1045 = vsel %vm1033, %v1027, %v1044
        %v1046 = vsel %vm1032, %v1043, %v1045
        %v1047 = vshll.u32 %v1007, 8
        %v1048 = vmul.u32.u64.compose %v1047, %v1046
        %v1049 = vextract.low.u32 %v1048
        %v1050 = vextract.high.u32 %v1048
        %v1051 = vmul.u32.u64.compose %v1047, %v1042
        %v1052 = vextract.low.u32 %v1051
        %v1053 = vextract.high.u32 %v1051
        %v1054 = vmul.u32 %v1047, %v1038
        %v1055 = vadd.s32 %v1050, %v1052
        %vm1056 = vc.u32 %v1050, %v1052
        %v1057 = vadd.s32 %v1053, 1
        %v1058 = vsel %vm1056, %v1057, %v1053
        %v1059 = vadd.s32 %v1054, %v1058
        %v1060 = vadd.s32 %v1059, 536870912
        %v1061 = vshrl.u32 %v1060, 30
        %v1062 = vshll.u32 %v1061, 30
        %v1063 = vsub.s32 %v1059, %v1062
        %vm1064 = vcmp.lt.s32.totalorder %v1063, 0
        %v1065 = vsub.s32 0, %v1063
        %v1066 = vsel %vm1064, %v1065, %v1063
        %v1067 = vclz %v1066
        %v1068 = vsub.s32 %v1067, 2
        %vm1069 = vcmp.gt.s32.totalorder 0, %v1068
        %v1070 = vsel %vm1069, 0, %v1068
        %v1071 = vsub.s32 32, %v1070
        %v1072 = vshll.u32 %v1063, %v1070
        %v1073 = vshrl.u32 %v1055, %v1071
        %v1074 = vor.u32 %v1072, %v1073
        %v1075 = vsub.s32 4294967266, %v1070
        %v1076 = vadd.s32 %v1075, 127
        %v1077 = vshll.u32 %v1076, 23
        %v1078 = vor.u32 4788187, %v1077
        %v1079 = vand.u32 2147483647, %v1078
        %v1081 = vcvt.s32.f32 %v1074
        %v1082 = vmul.f32 %v1081, %v1079
        %v1083 = vxor.u32 %v1082, 2147483648
        %v1084 = vsel %vm1001, %v1083, %v1082
        %v1085 = vsub.s32 4, %v1061
        %v1086 = vsel %vm1001, %v1085, %v1061
        %v1087 = vsel %vm1000, %v789, %v1084
        %v1088 = vsel %vm1000, 0, %v1086
        %v1089 = vcosq.f32.pop %v1087
        %v1090 = vsinq.f32.pop %v1087
        %vm1091 = vweird.f32 %v789
        %v1092 = vadd.s32 %v1088, 3
        %v1093 = vand.u32 %v1092, 3
        %vm1094 = vcmp.lt.s32.totalorder %v1093, 2
        %vm1095 = vcmp.eq.s32.totalorder %v1093, 0
        %v1096 = vxor.u32 %v1090, 2147483648
        %v1097 = vsel %vm1095, %v1089, %v1096
        %vm1098 = vcmp.eq.s32.totalorder %v1093, 2
        %v1099 = vxor.u32 %v1089, 2147483648
        %v1100 = vsel %vm1098, %v1099, %v1090
        %v1101 = vsel %vm1094, %v1097, %v1100
        %v1102 = vsel %vm1091, nan, %v1101
        %v1103 = vand.u32 2147483647, %v790
        %vm1104 = vcmp.le.f32.partialorder %v1103, 0.7853982
        %vm1105 = vcmp.lt.s32.totalorder %v790, 0
        %v1106 = vand.u32 %v790, 2139095040
        %v1107 = vshrl.u32 %v1106, 23
        %v1108 = vsub.s32 %v1107, 127
        %v1109 = vand.u32 2147483647, %v790
        %v1110 = vand.u32 %v1109, 8388607
        %v1111 = vor.u32 %v1110, 8388608
        %v1112 = vsub.s32 0, %v1111
        %v1113 = vadd.s32 %v1108, 1
        %vm1114 = vcmp.gt.s32.totalorder %v1113, 0
        %v1115 = vsel %vm1114, %v1113, 0
        %v1116 = vshrl.u32 %v1115, 5
        %v1117 = vand.u32 %v1115, 31
        %v1118 = vsub.s32 32, %v1117
        %v1119 = vshrl.u32 683565275, %v1118
        %v1120 = vshll.u32 683565275, %v1117
        %v1121 = vshrl.u32 2475754826, %v1118
        %v1122 = vor.u32 %v1120, %v1121
        %v1123 = vshll.u32 2475754826, %v1117
        %v1124 = vshrl.u32 2131351028, %v1118
        %v1125 = vor.u32 %v1123, %v1124
        %v1126 = vshll.u32 2131351028, %v1117
        %v1127 = vshrl.u32 2102212464, %v1118
        %v1128 = vor.u32 %v1126, %v1127
        %v1129 = vshll.u32 2102212464, %v1117
        %v1130 = vshrl.u32 920167782, %v1118
        %v1131 = vor.u32 %v1129, %v1130
        %v1132 = vshll.u32 920167782, %v1117
        %v1133 = vshrl.u32 1326507024, %v1118
        %v1134 = vor.u32 %v1132, %v1133
        %vm1135 = vcmp.lt.s32.totalorder %v1116, 1
        %vm1136 = vcmp.lt.s32.totalorder %v1116, 2
        %vm1137 = vcmp.lt.s32.totalorder %v1116, 3
        %vm1138 = vcmp.lt.s32.totalorder %v1116, 4
        %v1139 = vsel %vm1135, %v1119, %v1122
        %v1140 = vsel %vm1138, %v1128, 2102212464
        %v1141 = vsel %vm1137, %v1125, %v1140
        %v1142 = vsel %vm1136, %v1139, %v1141
        %v1143 = vsel %vm1135, %v1122, %v1125
        %v1144 = vsel %vm1138, %v1131, 920167782
        %v1145 = vsel %vm1137, %v1128, %v1144
        %v1146 = vsel %vm1136, %v1143, %v1145
        %v1147 = vsel %vm1135, %v1125, %v1128
        %v1148 = vsel %vm1138, %v1134, 1326507024
        %v1149 = vsel %vm1137, %v1131, %v1148
        %v1150 = vsel %vm1136, %v1147, %v1149
        %v1151 = vshll.u32 %v1111, 8
        %v1152 = vmul.u32.u64.compose %v1151, %v1150
        %v1153 = vextract.low.u32 %v1152
        %v1154 = vextract.high.u32 %v1152
        %v1155 = vmul.u32.u64.compose %v1151, %v1146
        %v1156 = vextract.low.u32 %v1155
        %v1157 = vextract.high.u32 %v1155
        %v1158 = vmul.u32 %v1151, %v1142
        %v1159 = vadd.s32 %v1154, %v1156
        %vm1160 = vc.u32 %v1154, %v1156
        %v1161 = vadd.s32 %v1157, 1
        %v1162 = vsel %vm1160, %v1161, %v1157
        %v1163 = vadd.s32 %v1158, %v1162
        %v1164 = vadd.s32 %v1163, 536870912
        %v1165 = vshrl.u32 %v1164, 30
        %v1166 = vshll.u32 %v1165, 30
        %v1167 = vsub.s32 %v1163, %v1166
        %vm1168 = vcmp.lt.s32.totalorder %v1167, 0
        %v1169 = vsub.s32 0, %v1167
        %v1170 = vsel %vm1168, %v1169, %v1167
        %v1171 = vclz %v1170
        %v1172 = vsub.s32 %v1171, 2
        %vm1173 = vcmp.gt.s32.totalorder 0, %v1172
        %v1174 = vsel %vm1173, 0, %v1172
        %v1175 = vsub.s32 32, %v1174
        %v1176 = vshll.u32 %v1167, %v1174
        %v1177 = vshrl.u32 %v1159, %v1175
        %v1178 = vor.u32 %v1176, %v1177
        %v1179 = vsub.s32 4294967266, %v1174
        %v1180 = vadd.s32 %v1179, 127
        %v1181 = vshll.u32 %v1180, 23
        %v1182 = vor.u32 4788187, %v1181
        %v1183 = vand.u32 2147483647, %v1182
        %v1185 = vcvt.s32.f32 %v1178
        %v1186 = vmul.f32 %v1185, %v1183
        %v1187 = vxor.u32 %v1186, 2147483648
        %v1188 = vsel %vm1105, %v1187, %v1186
        %v1189 = vsub.s32 4, %v1165
        %v1190 = vsel %vm1105, %v1189, %v1165
        %v1191 = vsel %vm1104, %v790, %v1188
        %v1192 = vsel %vm1104, 0, %v1190
        %v1193 = vcosq.f32.pop %v1191
        %v1194 = vsinq.f32.pop %v1191
        %vm1195 = vweird.f32 %v790
        %v1196 = vadd.s32 %v1192, 3
        %v1197 = vand.u32 %v1196, 3
        %vm1198 = vcmp.lt.s32.totalorder %v1197, 2
        %vm1199 = vcmp.eq.s32.totalorder %v1197, 0
        %v1200 = vxor.u32 %v1194, 2147483648
        %v1201 = vsel %vm1199, %v1193, %v1200
        %vm1202 = vcmp.eq.s32.totalorder %v1197, 2
        %v1203 = vxor.u32 %v1193, 2147483648
        %v1204 = vsel %vm1202, %v1203, %v1194
        %v1205 = vsel %vm1198, %v1201, %v1204
        %v1206 = vsel %vm1195, nan, %v1205
        %v1207 = vmul.f32 %v894, %v894
        %v1208 = vmul.f32 %v998, %v998
        %v1209 = vmul.f32 %v1102, %v1102
        %v1210 = vmul.f32 %v1206, %v1206
        %v1211 = vadd.f32 %v787, %v1207
        %v1212 = vadd.f32 %v788, %v1208
        %v1213 = vadd.f32 %v789, %v1209
        %v1214 = vadd.f32 %v790, %v1210
        %v1215 = vld [vmem:[%s8] sm:$0xff]
        %v1216 = vld [vmem:[%s9] sm:$0xff]
        %1218 = vset.pattern.permute.xlu0 0
        %1219 = vperm.xlu0 %1218, %v1216
        %v1220 = vpop.permute.xlu0 %1219
        %vm1222 = vcmask 261120
        %v1224 = vsel %vm1222, %v1215, 0
        %1226 = vmatprep.subr.mxu0 0.0
        %1227 = vmatpush1.msra.mxu0 %v1211
        %1228 = vmatprep.subr.mxu0 0.0
        %1229 = vmatpush1.msra.mxu0 %v1212
        %1230 = vmatprep.subr.mxu0 0.0
        %1231 = vmatpush1.msra.mxu0 %v1213
        %1232 = vmatprep.subr.mxu0 0.0
        %1233 = vmatpush1.msra.mxu0 %v1214
        %1234 = vmatprep.subr.mxu0 0.0
        %1235 = vmatpush1.msra.mxu0 0.0
        %1236 = vmatprep.subr.mxu0 0.0
        %1237 = vmatpush1.msra.mxu0 0.0
        %1238 = vmatprep.subr.mxu0 0.0
        %1239 = vmatpush1.msra.mxu0 0.0
        %1240 = vmatprep.subr.mxu0 0.0
        %1241 = vmatpush1.msra.mxu0 0.0
        %1242 = vmatprep.subr.mxu0 0.0
        %1243 = vmatpush1.msra.mxu0 0.0
        %1244 = vmatprep.subr.mxu0 0.0
        %1245 = vmatpush1.msra.mxu0 0.0
        %1246 = vmatprep.subr.mxu0 0.0
        %1247 = vmatpush1.msra.mxu0 0.0
        %1248 = vmatprep.subr.mxu0 0.0
        %1249 = vmatpush1.msra.mxu0 0.0
        %1250 = vmatprep.subr.mxu0 0.0
        %1251 = vmatpush1.msra.mxu0 0.0
        %1252 = vmatprep.subr.mxu0 0.0
        %1253 = vmatpush1.msra.mxu0 0.0
        %1254 = vmatprep.subr.mxu0 0.0
        %1255 = vmatpush1.msra.mxu0 0.0
        %1256 = vmatprep.subr.mxu0 0.0
        %1257 = vmatpush1.msra.mxu0 0.0
        %1258 = vmatprep.subr.mxu0 0.0
        %1259 = vmatpush1.msra.mxu0 0.0
        %1260 = vmatprep.subr.mxu0 0.0
        %1261 = vmatpush1.msra.mxu0 0.0
        %1262 = vmatprep.subr.mxu0 0.0
        %1263 = vmatpush1.msra.mxu0 0.0
        %1264 = vmatprep.subr.mxu0 0.0
        %1265 = vmatpush1.msra.mxu0 0.0
        %1266 = vmatprep.subr.mxu0 0.0
        %1267 = vmatpush1.msra.mxu0 0.0
        %1268 = vmatprep.subr.mxu0 0.0
        %1269 = vmatpush1.msra.mxu0 0.0
        %1270 = vmatprep.subr.mxu0 0.0
        %1271 = vmatpush1.msra.mxu0 0.0
        %1272 = vmatprep.subr.mxu0 0.0
        %1273 = vmatpush1.msra.mxu0 0.0
        %1274 = vmatprep.subr.mxu0 0.0
        %1275 = vmatpush1.msra.mxu0 0.0
        %1276 = vmatprep.subr.mxu0 0.0
        %1277 = vmatpush1.msra.mxu0 0.0
        %1278 = vmatprep.subr.mxu0 0.0
        %1279 = vmatpush1.msra.mxu0 0.0
        %1280 = vmatprep.subr.mxu0 0.0
        %1281 = vmatpush1.msra.mxu0 0.0
        %1282 = vmatprep.subr.mxu0 0.0
        %1283 = vmatpush1.msra.mxu0 0.0
        %1284 = vmatprep.subr.mxu0 0.0
        %1285 = vmatpush1.msra.mxu0 0.0
        %1286 = vmatprep.subr.mxu0 0.0
        %1287 = vmatpush1.msra.mxu0 0.0
        %1288 = vmatprep.subr.mxu0 0.0
        %1289 = vmatpush1.msra.mxu0 0.0
        %1290 = vmatprep.mubr.f32.mxu0 0.0
        %1291 = vmatmul.mubr.f32.gmra.mrb[0].mxu0 %v1224
        %v1292 = vpop.f32.mrb[0].mxu0
        %v1293 = vadd.f32 %v1220, %v1292
        %v1294 = vpop.f32.mrb[0].mxu0
        %1295 = vdwg.mxu0
        %v1297 = vlaneseq
        %v1298 = vshrl.u32 %v1297, 7
        %v1299 = vsub.s32 0, %v1298
        %v1300 = vrot.slane %v549, %v1299
        %v1302 = vmul.f32 %v1293, %v1300
        %v1303 = vsub.f32 %v1302, %v558
        %v1304 = vmul.f32 %v1303, %v1303
        %1305 = vadd.xlane.f32.xlu0 %v1304
        %v1306 = vpop.xlane.xlu0 %1305
        %v1307 = vrot.slane %v1306, 4
        %v1308 = vadd.f32 %v1306, %v1307
        %v1309 = vrot.slane %v1308, 2
        %v1310 = vadd.f32 %v1308, %v1309
        %v1311 = vrot.slane %v1310, 1
        %v1312 = vadd.f32 %v1310, %v1311
        %vm1313 = vcmask 0
        %1314 = vst.msk [vmem:[%s544] sm:$0x1] %vm1313, %v1312
        %p1315 = scmp.lt.s32.totalorder %s28, 1
        %s1316 = scalar_select %p1315, %s28, 1
        %p1317 = scmp.lt.s32.totalorder %s29, 0
        %s1318 = scalar_select %p1317, %s29, 0
        %s1319 = sadd.s32 %s1318, %s1316
        %s1320 = smul.addr %s1319, 8
        %s1321 = scalar_lea.vmem %s10, %s1320
        %p1322 = scmp.lt.s32.totalorder %s28, 1
        %s1323 = scalar_select %p1322, %s28, 1
        %p1324 = scmp.lt.s32.totalorder %s29, 0
        %s1325 = scalar_select %p1324, %s29, 0
        %s1326 = sadd.s32 %s1325, %s1323
        %s1327 = scalar_lea.vmem %s11, %s1326
        // Predicated region
        $region65: #{cfm_forward.11} parent=59 // pred_check
          %p1328 = pneg %p299
        $region66: #{cfm_forward.11} parent=59 // pred_check_branch
          %1330 = sbr.rel (%p1328) target = $region68
        $region67: #{cfm_forward.11} parent=59 // pred_region
          _
        $region68: #{cfm_forward.11} parent=59 // pred_fallthru
          _
        // Predicated region
        $region69: #{cfm_forward.11} parent=59 // pred_check
          %p1331 = pneg %p327
        $region70: #{cfm_forward.11} parent=59 // pred_check_branch
          %1333 = sbr.rel (%p1331) target = $region72
        $region71: #{cfm_forward.11} parent=59 // pred_region
          _
        $region72: #{cfm_forward.11} parent=59 // pred_fallthru
          _
      $region60: #{cfm_forward.11} parent=5 // pred_fallthru
        _
      %p1334 = scmp.le.s32.totalorder 2, %s19
      // Predicated region
      $region73: #{cfm_forward.11} parent=5 // pred_check
        %p1335 = pneg %p1334
      $region74: #{cfm_forward.11} parent=5 // pred_check_branch
        %1337 = sbr.rel (%p1335) target = $region76
      $region75: #{cfm_forward.11} parent=5 // pred_region
        %s1338 = ssub.s32 %s19, 2
        // Predicated region
        $region77: #{cfm_forward.11} parent=75 // pred_check
          %p1339 = pneg %p305
        $region78: #{cfm_forward.11} parent=75 // pred_check_branch
          %1341 = sbr.rel (%p1339) target = $region80
        $region79: #{cfm_forward.11} parent=75 // pred_region
          %p1342 = scmp.lt.s32.totalorder %s30, 1
          %s1343 = scalar_select %p1342, %s30, 1
          %p1344 = scmp.lt.s32.totalorder %s31, 0
          %s1345 = scalar_select %p1344, %s31, 0
          %s1346 = sadd.s32 %s1345, %s1343
          %s1347 = smul.addr %s1346, 8
          %s1348 = scalar_lea.vmem %s10, %s1347
        $region80: #{cfm_forward.11} parent=75 // pred_fallthru
          _
        // Predicated region
        $region81: #{cfm_forward.11} parent=75 // pred_check
          %p1349 = pneg %p333
        $region82: #{cfm_forward.11} parent=75 // pred_check_branch
          %1351 = sbr.rel (%p1349) target = $region84
        $region83: #{cfm_forward.11} parent=75 // pred_region
          %p1352 = scmp.lt.s32.totalorder %s30, 1
          %s1353 = scalar_select %p1352, %s30, 1
          %p1354 = scmp.lt.s32.totalorder %s31, 0
          %s1355 = scalar_select %p1354, %s31, 0
          %s1356 = sadd.s32 %s1355, %s1353
          %s1357 = scalar_lea.vmem %s11, %s1356
        $region84: #{cfm_forward.11} parent=75 // pred_fallthru
          _
      $region76: #{cfm_forward.11} parent=5 // pred_fallthru
        _
    $region6: #{cfm_forward.11} parent=1 // loop_footer
      %s23 = sadd.s32 1, %s19
    $region7: #{cfm_forward.11} parent=1 // loop_footer_branch
      %18 = sbr.rel target = $region3
    $region8: #{cfm_forward.11} parent=1 // loop_exit
      _
    %1358 = vsyncpa [#allocation3], 1
    %s1359 = scalar_lea.sflag [#allocation3], 1
    %1360 = vsyncpa %s1359, 1

</llo_original>
